<compile_context>
chip_gen: v7x
topology: tpu7x:2x2x1
jax: 0.10.0
libtpu: 0.0.40
codegen_flags: <defaults>
</compile_context>

<pallas_src>
import math

import jax
import jax.numpy as jnp
from jax.experimental import pallas as pl
from jax.experimental.pallas import tpu as pltpu

RATES = (6, 12, 18)
RMAX = max(RATES)


# ------------------------------- Pallas kernel ---------------------------------

def _make_aspp_kernel(wp, n_lanes):
    """wp: padded row stride; n_lanes = H * wp (output lane count)."""
    # Static flat offsets of the 9 conv taps per dilation rate.
    offsets = [[(RMAX + di * r) * wp + (RMAX + dj * r)
                for di in (-1, 0, 1) for dj in (-1, 0, 1)] for r in RATES]

    def kernel(xf_ref, w_ref, wout_ref, bias_ref, o_ref):
        # xf_ref  : (1, Cin, Hp*wp)    bf16  RMAX-padded flattened input, one batch elem
        # w_ref   : (3, Cout, 9*Cin)   bf16  per-branch conv weights, K order (ki,kj,cin)
        # wout_ref: (Cout, 3*Cout)     bf16  1x1 conv weights with BN scale folded in
        # bias_ref: (Cout, 1)          f32   BN shift pushed through the 1x1 conv
        # o_ref   : (1, Cout, n_lanes) f32   (right-pad columns sliced off by wrapper)
        xf = xf_ref[0]                                                # (Cin, Hp*wp) bf16
        branch = []
        for bi in range(len(RATES)):
            # 9 taps = 9 contiguous windows of the flat padded image (VMEM-only slices).
            taps = jnp.concatenate([xf[:, o:o + n_lanes] for o in offsets[bi]],
                                   axis=0)                            # (9*Cin, N) bf16
            y = jnp.dot(w_ref[bi], taps,
                        preferred_element_type=jnp.float32)           # (Cout, N) f32
            # Mish: y*tanh(softplus(y)) == y*(u^2-1)/(u^2+1), u = 1+e^y  (1 exp + vrcp)
            u = 1.0 + jnp.exp(jnp.minimum(y, 20.0))
            u2 = u * u
            m = y * (u2 - 1.0) * pl.reciprocal(u2 + 1.0, approx=True)
            m = jnp.where(y > 20.0, y, m)                             # mish(y) ~ y, y>>0
            branch.append(m.astype(jnp.bfloat16))
        ycat = jnp.concatenate(branch, axis=0)                        # (3*Cout, N) bf16
        # Dropout(0.2) == identity at inference; eval-BN already folded into wout/bias.
        o_ref[0] = (jnp.dot(wout_ref[...], ycat,
                            preferred_element_type=jnp.float32)
                    + bias_ref[...])                                  # (Cout, N) f32

    return kernel


# --------------------------------- wrapper --------------------------------------

def aspp_forward(x_nchw, params):
    x = x_nchw.astype(jnp.float32)
    B, Cin, H, W = x.shape
    nb = len(RATES)
    Cout = params['w_out'].shape[0]

    # Single zero-pad by the largest dilation.  Extra right columns make H*wp a
    # multiple of 128 (lane-dense output stores); one extra bottom row keeps every
    # tap's contiguous flat slice in bounds.
    extra_w = (-(W + 2 * RMAX)) % (128 // math.gcd(H, 128))
    wp = W + 2 * RMAX + extra_w
    hp = H + 2 * RMAX + 1
    n_lanes = H * wp
    xp = jnp.pad(x, ((0, 0), (0, 0), (RMAX, RMAX + 1), (RMAX, RMAX + extra_w)))
    xflat = xp.reshape(B, Cin, hp * wp).astype(jnp.bfloat16)

    # Per-branch (Cout, 9*Cin) conv weights, K ordered (ki, kj, cin) to match the
    # in-kernel tap concatenation order.
    wb = jnp.transpose(params['w_branch'], (0, 1, 3, 4, 2)).reshape(nb, Cout, 9 * Cin)
    wb = wb.astype(jnp.bfloat16)

    # Fold eval-BN (applied after Mish) into the 1x1 conv:
    #   out = Wout @ (s*mish + t) = (Wout * s_cols) @ mish + Wout @ t
    s = params['bn_scale'].reshape(nb * Cout)
    t = params['bn_shift'].reshape(nb * Cout)
    wout = params['w_out'].astype(jnp.float32)
    wout_s = (wout * s[None, :]).astype(jnp.bfloat16)            # (Cout, 3*Cout)
    bias = (wout @ t).reshape(Cout, 1).astype(jnp.float32)       # (Cout, 1)

    kernel = _make_aspp_kernel(wp, n_lanes)
    out = pl.pallas_call(
        kernel,
        out_shape=jax.ShapeDtypeStruct((B, Cout, n_lanes), jnp.float32),
        grid=(B,),
        in_specs=[
            pl.BlockSpec((1, Cin, hp * wp), lambda b: (b, 0, 0)),
            # grid-invariant operands (constant index_map) stay resident in VMEM
            pl.BlockSpec((nb, Cout, 9 * Cin), lambda b: (0, 0, 0)),
            pl.BlockSpec((Cout, nb * Cout), lambda b: (0, 0)),
            pl.BlockSpec((Cout, 1), lambda b: (0, 0)),
        ],
        out_specs=pl.BlockSpec((1, Cout, n_lanes), lambda b: (b, 0, 0)),
        compiler_params=pltpu.CompilerParams(
            dimension_semantics=("parallel",),
            vmem_limit_bytes=32 * 1024 * 1024),
    )(xflat, wb, wout_s, bias)

    # Drop the right-pad garbage columns; back to NCHW.
    return out.reshape(B, Cout, H, wp)[:, :, :, :W]


# ------------------------------- parameters -------------------------------------

def _kaiming_pruned(key, shape, fan_in):
    # kaiming_normal_ (gain sqrt(2)), then ~5% of the weights zeroed (module _init_weights).
    kw, km = jax.random.split(key)
    w = jnp.sqrt(2.0 / fan_in) * jax.random.normal(kw, shape, jnp.float32)
    return jnp.where(jax.random.uniform(km, shape) < 0.05, 0.0, w)


def init_params(key, in_dims, out_dims):
    nb = len(RATES)
    keys = jax.random.split(key, nb + 1)
    w_branch = jnp.stack([
        _kaiming_pruned(keys[i], (out_dims, in_dims, 3, 3), fan_in=in_dims * 9)
        for i in range(nb)])
    # BatchNorm2d eval affine (module init: gamma=1, beta=0; untrained running stats
    # mean=0, var=1) folded to a per-channel scale/shift applied after Mish.
    eps = 1e-5
    gamma = jnp.ones((nb, out_dims), jnp.float32)
    beta = jnp.zeros((nb, out_dims), jnp.float32)
    mean = jnp.zeros((nb, out_dims), jnp.float32)
    var = jnp.ones((nb, out_dims), jnp.float32)
    scale = gamma * jax.lax.rsqrt(var + eps)
    shift = beta - mean * scale
    w_out = _kaiming_pruned(keys[-1], (out_dims, nb * out_dims), fan_in=nb * out_dims)
    return {
        'w_branch': w_branch,   # (3, Cout, Cin, 3, 3)
        'bn_scale': scale,      # (3, Cout)
        'bn_shift': shift,      # (3, Cout)
        'w_out': w_out,         # (Cout, 3*Cout)
    }


# ----------------------------- plain-JAX reference -------------------------------

def aspp_reference(x, params):
    s = params['bn_scale']
    t = params['bn_shift']
    outs = []
    for i, r in enumerate(RATES):
        y = jax.lax.conv_general_dilated(
            x, params['w_branch'][i], window_strides=(1, 1),
            padding=((r, r), (r, r)), rhs_dilation=(r, r),
            dimension_numbers=('NCHW', 'OIHW', 'NCHW'),
            precision=jax.lax.Precision.HIGHEST)
        y = y * jnp.tanh(jax.nn.softplus(y))                            # Mish
        y = y * s[i][None, :, None, None] + t[i][None, :, None, None]   # eval BN
        outs.append(y)
    cat = jnp.concatenate(outs, axis=1)
    return jnp.einsum('oc,bchw->bohw', params['w_out'], cat,
                      precision=jax.lax.Precision.HIGHEST)


# ----------------------------------- main ----------------------------------------

if __name__ == "__main__":
    B, Cin, H, W = 2, 4, 16, 16
    out_dims = 8
    key = jax.random.PRNGKey(0)
    kx, kp = jax.random.split(key)
    x = jax.random.normal(kx, (B, Cin, H, W), jnp.float32)
    params = init_params(kp, Cin, out_dims)

    fwd = jax.jit(aspp_forward)
    y = jax.block_until_ready(fwd(x, params))

    assert y.shape == (B, out_dims, H, W), y.shape
    assert bool(jnp.all(jnp.isfinite(y)))

    # correctness vs. an f32 XLA reference (kernel matmuls run bf16 on the MXU).
    ref = aspp_reference(x, params)
    assert bool(jnp.allclose(y, ref, rtol=0.05, atol=0.15)), \
        float(jnp.max(jnp.abs(y - ref)))

    print("KERNEL_OK")
</pallas_src>

<mosaic_0001>
module attributes {stable_mosaic.version = 11 : i64} {
  func.func @kernel(%arg0: i32, %arg1: memref<1x4x2968xbf16, #tpu.memory_space<vmem>>, %arg2: memref<3x8x36xbf16, #tpu.memory_space<vmem>>, %arg3: memref<8x24xbf16, #tpu.memory_space<vmem>>, %arg4: memref<8x1xf32, #tpu.memory_space<vmem>>, %arg5: memref<1x8x896xf32, #tpu.memory_space<vmem>>) attributes {dimension_semantics = [#tpu.dimension_semantics<parallel>], iteration_bounds = array<i64: 2>, scalar_prefetch = 0 : i64, scratch_operands = 0 : i64, tpu.core_type = #tpu.core_type<tc>, window_params = [{transform_indices = @transform_0, window_bounds = array<i64: 1, 4, 2968>}, {pipeline_mode = #tpu.pipeline_mode<synchronous>, transform_indices = @transform_1, window_bounds = array<i64: 3, 8, 36>}, {pipeline_mode = #tpu.pipeline_mode<synchronous>, transform_indices = @transform_2, window_bounds = array<i64: 8, 24>}, {pipeline_mode = #tpu.pipeline_mode<synchronous>, transform_indices = @transform_3, window_bounds = array<i64: 8, 1>}, {transform_indices = @transform_4, window_bounds = array<i64: 1, 8, 896>}]} {
    %c0 = arith.constant 0 : index
    %c0_0 = arith.constant 0 : index
    %c0_1 = arith.constant 0 : index
    %0 = vector.load %arg1[%c0, %c0_0, %c0_1] : memref<1x4x2968xbf16, #tpu.memory_space<vmem>>, vector<1x4x2968xbf16>
    %1 = vector.shape_cast %0 : vector<1x4x2968xbf16> to vector<4x2968xbf16>
    %2 = vector.extract_strided_slice %1 {offsets = [0, 684], sizes = [4, 896], strides = [1, 1]} : vector<4x2968xbf16> to vector<4x896xbf16>
    %3 = vector.extract_strided_slice %1 {offsets = [0, 690], sizes = [4, 896], strides = [1, 1]} : vector<4x2968xbf16> to vector<4x896xbf16>
    %4 = vector.extract_strided_slice %1 {offsets = [0, 696], sizes = [4, 896], strides = [1, 1]} : vector<4x2968xbf16> to vector<4x896xbf16>
    %5 = vector.extract_strided_slice %1 {offsets = [0, 1020], sizes = [4, 896], strides = [1, 1]} : vector<4x2968xbf16> to vector<4x896xbf16>
    %6 = vector.extract_strided_slice %1 {offsets = [0, 1026], sizes = [4, 896], strides = [1, 1]} : vector<4x2968xbf16> to vector<4x896xbf16>
    %7 = vector.extract_strided_slice %1 {offsets = [0, 1032], sizes = [4, 896], strides = [1, 1]} : vector<4x2968xbf16> to vector<4x896xbf16>
    %8 = vector.extract_strided_slice %1 {offsets = [0, 1356], sizes = [4, 896], strides = [1, 1]} : vector<4x2968xbf16> to vector<4x896xbf16>
    %9 = vector.extract_strided_slice %1 {offsets = [0, 1362], sizes = [4, 896], strides = [1, 1]} : vector<4x2968xbf16> to vector<4x896xbf16>
    %10 = vector.extract_strided_slice %1 {offsets = [0, 1368], sizes = [4, 896], strides = [1, 1]} : vector<4x2968xbf16> to vector<4x896xbf16>
    %11 = tpu.concatenate %2, %3, %4, %5, %6, %7, %8, %9, %10 in 0 : vector<4x896xbf16>, vector<4x896xbf16>, vector<4x896xbf16>, vector<4x896xbf16>, vector<4x896xbf16>, vector<4x896xbf16>, vector<4x896xbf16>, vector<4x896xbf16>, vector<4x896xbf16> -> vector<36x896xbf16>
    %c0_2 = arith.constant 0 : index
    %c0_3 = arith.constant 0 : index
    %c0_4 = arith.constant 0 : index
    %12 = vector.load %arg2[%c0_2, %c0_3, %c0_4] : memref<3x8x36xbf16, #tpu.memory_space<vmem>>, vector<1x8x36xbf16>
    %13 = vector.shape_cast %12 : vector<1x8x36xbf16> to vector<8x36xbf16>
    %cst = arith.constant dense<0.000000e+00> : vector<8x896xf32>
    %14 = tpu.matmul %13, %11, %cst {dimension_numbers = #tpu.dot_dimension_numbers<[1], [0], [0], [1], [0, 0, 1, 1], [], []>} : vector<8x36xbf16>, vector<36x896xbf16>, vector<8x896xf32> -> vector<8x896xf32>
    %cst_5 = arith.constant 2.000000e+01 : f32
    %15 = vector.broadcast %cst_5 : f32 to vector<8x896xf32>
    %16 = arith.minimumf %14, %15 : vector<8x896xf32>
    %17 = math.exp %16 : vector<8x896xf32>
    %cst_6 = arith.constant 1.000000e+00 : f32
    %18 = vector.broadcast %cst_6 : f32 to vector<8x896xf32>
    %19 = arith.addf %18, %17 : vector<8x896xf32>
    %20 = arith.mulf %19, %19 : vector<8x896xf32>
    %cst_7 = arith.constant 1.000000e+00 : f32
    %21 = vector.broadcast %cst_7 : f32 to vector<8x896xf32>
    %22 = arith.subf %20, %21 : vector<8x896xf32>
    %23 = arith.mulf %14, %22 : vector<8x896xf32>
    %cst_8 = arith.constant 1.000000e+00 : f32
    %24 = vector.broadcast %cst_8 : f32 to vector<8x896xf32>
    %25 = arith.addf %20, %24 : vector<8x896xf32>
    %26 = tpu.reciprocal %25 {approx = true} : vector<8x896xf32> -> vector<8x896xf32>
    %27 = arith.mulf %23, %26 : vector<8x896xf32>
    %cst_9 = arith.constant 2.000000e+01 : f32
    %28 = vector.broadcast %cst_9 : f32 to vector<8x896xf32>
    %29 = arith.cmpf ogt, %14, %28 : vector<8x896xf32>
    %30 = arith.select %29, %14, %27 : vector<8x896xi1>, vector<8x896xf32>
    %31 = arith.truncf %30 : vector<8x896xf32> to vector<8x896xbf16>
    %32 = vector.extract_strided_slice %1 {offsets = [0, 342], sizes = [4, 896], strides = [1, 1]} : vector<4x2968xbf16> to vector<4x896xbf16>
    %33 = vector.extract_strided_slice %1 {offsets = [0, 354], sizes = [4, 896], strides = [1, 1]} : vector<4x2968xbf16> to vector<4x896xbf16>
    %34 = vector.extract_strided_slice %1 {offsets = [0, 366], sizes = [4, 896], strides = [1, 1]} : vector<4x2968xbf16> to vector<4x896xbf16>
    %35 = vector.extract_strided_slice %1 {offsets = [0, 1014], sizes = [4, 896], strides = [1, 1]} : vector<4x2968xbf16> to vector<4x896xbf16>
    %36 = vector.extract_strided_slice %1 {offsets = [0, 1026], sizes = [4, 896], strides = [1, 1]} : vector<4x2968xbf16> to vector<4x896xbf16>
    %37 = vector.extract_strided_slice %1 {offsets = [0, 1038], sizes = [4, 896], strides = [1, 1]} : vector<4x2968xbf16> to vector<4x896xbf16>
    %38 = vector.extract_strided_slice %1 {offsets = [0, 1686], sizes = [4, 896], strides = [1, 1]} : vector<4x2968xbf16> to vector<4x896xbf16>
    %39 = vector.extract_strided_slice %1 {offsets = [0, 1698], sizes = [4, 896], strides = [1, 1]} : vector<4x2968xbf16> to vector<4x896xbf16>
    %40 = vector.extract_strided_slice %1 {offsets = [0, 1710], sizes = [4, 896], strides = [1, 1]} : vector<4x2968xbf16> to vector<4x896xbf16>
    %41 = tpu.concatenate %32, %33, %34, %35, %36, %37, %38, %39, %40 in 0 : vector<4x896xbf16>, vector<4x896xbf16>, vector<4x896xbf16>, vector<4x896xbf16>, vector<4x896xbf16>, vector<4x896xbf16>, vector<4x896xbf16>, vector<4x896xbf16>, vector<4x896xbf16> -> vector<36x896xbf16>
    %c1 = arith.constant 1 : index
    %c0_10 = arith.constant 0 : index
    %c0_11 = arith.constant 0 : index
    %42 = vector.load %arg2[%c1, %c0_10, %c0_11] : memref<3x8x36xbf16, #tpu.memory_space<vmem>>, vector<1x8x36xbf16>
    %43 = vector.shape_cast %42 : vector<1x8x36xbf16> to vector<8x36xbf16>
    %cst_12 = arith.constant dense<0.000000e+00> : vector<8x896xf32>
    %44 = tpu.matmul %43, %41, %cst_12 {dimension_numbers = #tpu.dot_dimension_numbers<[1], [0], [0], [1], [0, 0, 1, 1], [], []>} : vector<8x36xbf16>, vector<36x896xbf16>, vector<8x896xf32> -> vector<8x896xf32>
    %cst_13 = arith.constant 2.000000e+01 : f32
    %45 = vector.broadcast %cst_13 : f32 to vector<8x896xf32>
    %46 = arith.minimumf %44, %45 : vector<8x896xf32>
    %47 = math.exp %46 : vector<8x896xf32>
    %cst_14 = arith.constant 1.000000e+00 : f32
    %48 = vector.broadcast %cst_14 : f32 to vector<8x896xf32>
    %49 = arith.addf %48, %47 : vector<8x896xf32>
    %50 = arith.mulf %49, %49 : vector<8x896xf32>
    %cst_15 = arith.constant 1.000000e+00 : f32
    %51 = vector.broadcast %cst_15 : f32 to vector<8x896xf32>
    %52 = arith.subf %50, %51 : vector<8x896xf32>
    %53 = arith.mulf %44, %52 : vector<8x896xf32>
    %cst_16 = arith.constant 1.000000e+00 : f32
    %54 = vector.broadcast %cst_16 : f32 to vector<8x896xf32>
    %55 = arith.addf %50, %54 : vector<8x896xf32>
    %56 = tpu.reciprocal %55 {approx = true} : vector<8x896xf32> -> vector<8x896xf32>
    %57 = arith.mulf %53, %56 : vector<8x896xf32>
    %cst_17 = arith.constant 2.000000e+01 : f32
    %58 = vector.broadcast %cst_17 : f32 to vector<8x896xf32>
    %59 = arith.cmpf ogt, %44, %58 : vector<8x896xf32>
    %60 = arith.select %59, %44, %57 : vector<8x896xi1>, vector<8x896xf32>
    %61 = arith.truncf %60 : vector<8x896xf32> to vector<8x896xbf16>
    %62 = vector.extract_strided_slice %1 {offsets = [0, 0], sizes = [4, 896], strides = [1, 1]} : vector<4x2968xbf16> to vector<4x896xbf16>
    %63 = vector.extract_strided_slice %1 {offsets = [0, 18], sizes = [4, 896], strides = [1, 1]} : vector<4x2968xbf16> to vector<4x896xbf16>
    %64 = vector.extract_strided_slice %1 {offsets = [0, 36], sizes = [4, 896], strides = [1, 1]} : vector<4x2968xbf16> to vector<4x896xbf16>
    %65 = vector.extract_strided_slice %1 {offsets = [0, 1008], sizes = [4, 896], strides = [1, 1]} : vector<4x2968xbf16> to vector<4x896xbf16>
    %66 = vector.extract_strided_slice %1 {offsets = [0, 1026], sizes = [4, 896], strides = [1, 1]} : vector<4x2968xbf16> to vector<4x896xbf16>
    %67 = vector.extract_strided_slice %1 {offsets = [0, 1044], sizes = [4, 896], strides = [1, 1]} : vector<4x2968xbf16> to vector<4x896xbf16>
    %68 = vector.extract_strided_slice %1 {offsets = [0, 2016], sizes = [4, 896], strides = [1, 1]} : vector<4x2968xbf16> to vector<4x896xbf16>
    %69 = vector.extract_strided_slice %1 {offsets = [0, 2034], sizes = [4, 896], strides = [1, 1]} : vector<4x2968xbf16> to vector<4x896xbf16>
    %70 = vector.extract_strided_slice %1 {offsets = [0, 2052], sizes = [4, 896], strides = [1, 1]} : vector<4x2968xbf16> to vector<4x896xbf16>
    %71 = tpu.concatenate %62, %63, %64, %65, %66, %67, %68, %69, %70 in 0 : vector<4x896xbf16>, vector<4x896xbf16>, vector<4x896xbf16>, vector<4x896xbf16>, vector<4x896xbf16>, vector<4x896xbf16>, vector<4x896xbf16>, vector<4x896xbf16>, vector<4x896xbf16> -> vector<36x896xbf16>
    %c2 = arith.constant 2 : index
    %c0_18 = arith.constant 0 : index
    %c0_19 = arith.constant 0 : index
    %72 = vector.load %arg2[%c2, %c0_18, %c0_19] : memref<3x8x36xbf16, #tpu.memory_space<vmem>>, vector<1x8x36xbf16>
    %73 = vector.shape_cast %72 : vector<1x8x36xbf16> to vector<8x36xbf16>
    %cst_20 = arith.constant dense<0.000000e+00> : vector<8x896xf32>
    %74 = tpu.matmul %73, %71, %cst_20 {dimension_numbers = #tpu.dot_dimension_numbers<[1], [0], [0], [1], [0, 0, 1, 1], [], []>} : vector<8x36xbf16>, vector<36x896xbf16>, vector<8x896xf32> -> vector<8x896xf32>
    %cst_21 = arith.constant 2.000000e+01 : f32
    %75 = vector.broadcast %cst_21 : f32 to vector<8x896xf32>
    %76 = arith.minimumf %74, %75 : vector<8x896xf32>
    %77 = math.exp %76 : vector<8x896xf32>
    %cst_22 = arith.constant 1.000000e+00 : f32
    %78 = vector.broadcast %cst_22 : f32 to vector<8x896xf32>
    %79 = arith.addf %78, %77 : vector<8x896xf32>
    %80 = arith.mulf %79, %79 : vector<8x896xf32>
    %cst_23 = arith.constant 1.000000e+00 : f32
    %81 = vector.broadcast %cst_23 : f32 to vector<8x896xf32>
    %82 = arith.subf %80, %81 : vector<8x896xf32>
    %83 = arith.mulf %74, %82 : vector<8x896xf32>
    %cst_24 = arith.constant 1.000000e+00 : f32
    %84 = vector.broadcast %cst_24 : f32 to vector<8x896xf32>
    %85 = arith.addf %80, %84 : vector<8x896xf32>
    %86 = tpu.reciprocal %85 {approx = true} : vector<8x896xf32> -> vector<8x896xf32>
    %87 = arith.mulf %83, %86 : vector<8x896xf32>
    %cst_25 = arith.constant 2.000000e+01 : f32
    %88 = vector.broadcast %cst_25 : f32 to vector<8x896xf32>
    %89 = arith.cmpf ogt, %74, %88 : vector<8x896xf32>
    %90 = arith.select %89, %74, %87 : vector<8x896xi1>, vector<8x896xf32>
    %91 = arith.truncf %90 : vector<8x896xf32> to vector<8x896xbf16>
    %92 = tpu.concatenate %31, %61, %91 in 0 : vector<8x896xbf16>, vector<8x896xbf16>, vector<8x896xbf16> -> vector<24x896xbf16>
    %c0_26 = arith.constant 0 : index
    %c0_27 = arith.constant 0 : index
    %93 = vector.load %arg3[%c0_26, %c0_27] : memref<8x24xbf16, #tpu.memory_space<vmem>>, vector<8x24xbf16>
    %cst_28 = arith.constant dense<0.000000e+00> : vector<8x896xf32>
    %94 = tpu.matmul %93, %92, %cst_28 {dimension_numbers = #tpu.dot_dimension_numbers<[1], [0], [0], [1], [0, 0, 1, 1], [], []>} : vector<8x24xbf16>, vector<24x896xbf16>, vector<8x896xf32> -> vector<8x896xf32>
    %c0_29 = arith.constant 0 : index
    %c0_30 = arith.constant 0 : index
    %95 = vector.load %arg4[%c0_29, %c0_30] : memref<8x1xf32, #tpu.memory_space<vmem>>, vector<8x1xf32>
    %96 = vector.broadcast %95 : vector<8x1xf32> to vector<8x896xf32>
    %97 = arith.addf %94, %96 : vector<8x896xf32>
    %c0_31 = arith.constant 0 : index
    %c0_32 = arith.constant 0 : index
    %c0_33 = arith.constant 0 : index
    %98 = vector.load %arg5[%c0_31, %c0_32, %c0_33] : memref<1x8x896xf32, #tpu.memory_space<vmem>>, vector<1x8x896xf32>
    %99 = vector.shape_cast %98 : vector<1x8x896xf32> to vector<8x896xf32>
    %100 = vector.shape_cast %97 : vector<8x896xf32> to vector<1x8x896xf32>
    tpu.vector_store %arg5[%c0_31, %c0_32, %c0_33], %100 {strides = array<i32>} : memref<1x8x896xf32, #tpu.memory_space<vmem>>, vector<1x8x896xf32>,
    return
  }
  func.func @transform_0(%arg0: i32) -> (i32, i32, i32) {
    %c0_i32 = arith.constant 0 : i32
    %c0_i32_0 = arith.constant 0 : i32
    %c0_i32_1 = arith.constant 0 : i32
    return %arg0, %c0_i32, %c0_i32_0 : i32, i32, i32
  }
  func.func @transform_1(%arg0: i32) -> (i32, i32, i32) {
    %c0_i32 = arith.constant 0 : i32
    %c0_i32_0 = arith.constant 0 : i32
    %c0_i32_1 = arith.constant 0 : i32
    %c0_i32_2 = arith.constant 0 : i32
    return %c0_i32, %c0_i32_0, %c0_i32_1 : i32, i32, i32
  }
  func.func @transform_2(%arg0: i32) -> (i32, i32) {
    %c0_i32 = arith.constant 0 : i32
    %c0_i32_0 = arith.constant 0 : i32
    %c0_i32_1 = arith.constant 0 : i32
    return %c0_i32, %c0_i32_0 : i32, i32
  }
  func.func @transform_3(%arg0: i32) -> (i32, i32) {
    %c0_i32 = arith.constant 0 : i32
    %c0_i32_0 = arith.constant 0 : i32
    %c0_i32_1 = arith.constant 0 : i32
    return %c0_i32, %c0_i32_0 : i32, i32
  }
  func.func @transform_4(%arg0: i32) -> (i32, i32, i32) {
    %c0_i32 = arith.constant 0 : i32
    %c0_i32_0 = arith.constant 0 : i32
    %c0_i32_1 = arith.constant 0 : i32
    return %arg0, %c0_i32, %c0_i32_0 : i32, i32, i32
  }
}

</mosaic_0001>

<llo_original>
// kernel: mul.5
$region0: #{mul.5}
  %s0 = inlined_call_operand.hbm [shape: f32[3,8], index: 0, kind: input, shape index: {}]
  %s1 = inlined_call_operand.vmem [shape: f32[24], index: 1, kind: output, shape index: {}]
  $region1: #{mul.5} parent=0
    #allocation0 [shape = 'u8[2048]{0}', space=vmem, size = 0x800, scoped, tag = 'operand span for operand 0']
    #allocation1 [shape = 's32[1]{0}', space=sflag, size = 0x4, scoped, tag = 'scoped memory for mul.5']
    #allocation2 [shape = 'u8[4096]{0}', space=vmem, size = 0x1000, scoped, tag = 'scoped mem for output reshape']
    #allocation3 [shape = 'u8[4096]{0}', space=vmem, size = 0x1000, scoped, tag = 'scoped mem for input reshape']
    %2 = vsyncpa [#allocation1], 0
    %s4 = ssub.s32 64, 64
    %5 = vsyncadd [#allocation1], %s4
    %s7 = sshll.u32 [#allocation0], 4
    %s8 = int_to_ptr.vmem [resolvable:$true] %s7
    %10 = dma.hbm_to_vmem [thread:$0]  %s0, 64, %s8, [#allocation1]
    %11 = dma.done [#allocation1], 64
    %s13 = sshllo.u32 0, 4
    %v14 = vld [vmem:[#allocation0] sm:%s13]
    %15 = vst [vmem:[#allocation3] sm:%s13] %v14
    %v16 = vld [vmem:[#allocation3] sm:$0x1]
    %vm17 = vcmask 64512
    %18 = vst.msk [vmem:[#allocation2] sm:$0x1] %vm17, %v16
    %s19 = scalar_lea.vmem [#allocation3], 2
    %v20 = vld [vmem:[%s19] sm:$0x1]
    %21 = vrot.lane.b32.xlu0 %v20, 16
    %v22 = vpop.permute.xlu0 %21
    %vm23 = vcmask 195712
    %24 = vst.msk [vmem:[#allocation2] sm:$0x1] %vm23, %v22
    %s25 = scalar_lea.vmem [#allocation3], 1
    %v26 = vld [vmem:[%s25] sm:$0x1]
    %27 = vrot.lane.b32.xlu0 %v26, 8
    %v28 = vpop.permute.xlu0 %27
    %vm29 = vcmask 130112
    %30 = vst.msk [vmem:[#allocation2] sm:$0x1] %vm29, %v28
    %s32 = sshllo.u32 0, 1
    %v34 = vld [vmem:[#allocation2] sm:%s32]
    %s35 = sshllo.u32 0, 1
    %36 = vst [vmem:[%s1] sm:%s35] %v34
    %37 = vsyncpa [#allocation1], 1

// kernel: aspp_forward.1
$region0: #{aspp_forward.1}
  #allocation0 [shape = 'u32[]', space=smem, size = 0x4, offset = 0x4, fixed_abs, tag = 'smem constant byte address 0x4 - core index']
  #allocation1 [shape = 'u32[144,128]{1,0:T(1,128)}', space=vmem, size = 0x12000, scoped, tag = 'internal scratch']
  %s0 = inlined_call_operand.vmem [shape: bf16[2,4,2968], index: 0, kind: input, shape index: {}]
  %s1 = inlined_call_operand.vmem [shape: bf16[3,8,36], index: 1, kind: input, shape index: {}]
  %s2 = inlined_call_operand.vmem [shape: bf16[8,24], index: 2, kind: input, shape index: {}]
  %s3 = inlined_call_operand.vmem [shape: f32[8,1], index: 3, kind: input, shape index: {}]
  %s4 = inlined_call_operand.vmem [shape: f32[2,8,896], index: 4, kind: output, shape index: {}]
  %s5 = sld [smem:[#allocation0]]
  $region49: #{aspp_forward.1} parent=0
    _
  %s7 = ssub.s32 1, %s5
  %s8 = scalar_select 0, %s7, %s5
  loop: start=0, step=1, limit=4
  $region2: #{aspp_forward.1} parent=0 // loop_pre_header
    _
  $region3: #{aspp_forward.1} parent=0 // loop_header
    %s10 = sphi 0, %s14
    %p11 = scmp.ge.s32.totalorder %s10, 4
    %s20 = sphi 0, %s22
    %s23 = sphi 0, %s20
    %s24 = sphi 0, %s23
    %s40 = sphi 0, %s24
    %s44 = sphi 0, %s44
    %s46 = sphi 0, %s44
    %s47 = sphi 0, %s46
    %s61 = sphi 0, %s47
    %s65 = sphi 0, %s65
    %s67 = sphi 0, %s65
    %s68 = sphi 0, %s67
    %s82 = sphi 0, %s68
    %s86 = sphi 0, %s86
    %s88 = sphi 0, %s86
    %s89 = sphi 0, %s88
    %s103 = sphi 0, %s89
    %s109 = sphi 0, %s111
    %s112 = sphi 0, %s109
    %s113 = sphi 0, %s112
    %s129 = sphi 0, %s113
  $region4: #{aspp_forward.1} parent=0 // loop_header_branch
    %13 = sbr.rel (%p11) target = $region8
  $region5: #{aspp_forward.1} parent=0 // loop_body
    %s15 = ssub.s32 %s10, 1
    %s16 = ssub.s32 %s10, 2
    %s17 = sadd.s32 %s10, 1
    %s18 = ssub.s32 %s10, %s17
    %p19 = scmp.eq.s32.totalorder %s18, 0
    %s21 = sadd.s32 %s20, 1
    %s22 = scalar_select %p19, %s20, %s21
    %p25 = pneg %p19
    %p26 = scmp.eq.s32.totalorder %s10, 1
    %p27 = por %p25, %p26
    %p28 = scmp.ne.s32.totalorder %s20, %s23
    %p29 = scmp.eq.s32.totalorder %s10, 0
    %p30 = por %p28, %p29
    %p31 = scmp.ne.s32.totalorder %s20, %s23
    %p32 = scmp.eq.s32.totalorder %s15, 1
    %p33 = por %p31, %p32
    %p34 = scmp.ne.s32.totalorder %s23, %s24
    %p35 = scmp.eq.s32.totalorder %s15, 0
    %p36 = por %p34, %p35
    %p37 = scmp.ne.s32.totalorder %s23, %s24
    %p38 = scmp.eq.s32.totalorder %s16, 1
    %p39 = por %p37, %p38
    %p41 = scmp.ne.s32.totalorder %s24, %s40
    %p42 = scmp.eq.s32.totalorder %s16, 0
    %p43 = por %p41, %p42
    %s45 = sadd.s32 %s44, 1
    %p48 = scmp.eq.s32.totalorder %s10, 1
    %p49 = scmp.ne.s32.totalorder %s44, %s46
    %p50 = scmp.eq.s32.totalorder %s10, 0
    %p51 = por %p49, %p50
    %p52 = scmp.ne.s32.totalorder %s44, %s46
    %p53 = scmp.eq.s32.totalorder %s15, 1
    %p54 = por %p52, %p53
    %p55 = scmp.ne.s32.totalorder %s46, %s47
    %p56 = scmp.eq.s32.totalorder %s15, 0
    %p57 = por %p55, %p56
    %p58 = scmp.ne.s32.totalorder %s46, %s47
    %p59 = scmp.eq.s32.totalorder %s16, 1
    %p60 = por %p58, %p59
    %p62 = scmp.ne.s32.totalorder %s47, %s61
    %p63 = scmp.eq.s32.totalorder %s16, 0
    %p64 = por %p62, %p63
    %s66 = sadd.s32 %s65, 1
    %p69 = scmp.eq.s32.totalorder %s10, 1
    %p70 = scmp.ne.s32.totalorder %s65, %s67
    %p71 = scmp.eq.s32.totalorder %s10, 0
    %p72 = por %p70, %p71
    %p73 = scmp.ne.s32.totalorder %s65, %s67
    %p74 = scmp.eq.s32.totalorder %s15, 1
    %p75 = por %p73, %p74
    %p76 = scmp.ne.s32.totalorder %s67, %s68
    %p77 = scmp.eq.s32.totalorder %s15, 0
    %p78 = por %p76, %p77
    %p79 = scmp.ne.s32.totalorder %s67, %s68
    %p80 = scmp.eq.s32.totalorder %s16, 1
    %p81 = por %p79, %p80
    %p83 = scmp.ne.s32.totalorder %s68, %s82
    %p84 = scmp.eq.s32.totalorder %s16, 0
    %p85 = por %p83, %p84
    %s87 = sadd.s32 %s86, 1
    %p90 = scmp.eq.s32.totalorder %s10, 1
    %p91 = scmp.ne.s32.totalorder %s86, %s88
    %p92 = scmp.eq.s32.totalorder %s10, 0
    %p93 = por %p91, %p92
    %p94 = scmp.ne.s32.totalorder %s86, %s88
    %p95 = scmp.eq.s32.totalorder %s15, 1
    %p96 = por %p94, %p95
    %p97 = scmp.ne.s32.totalorder %s88, %s89
    %p98 = scmp.eq.s32.totalorder %s15, 0
    %p99 = por %p97, %p98
    %p100 = scmp.ne.s32.totalorder %s88, %s89
    %p101 = scmp.eq.s32.totalorder %s16, 1
    %p102 = por %p100, %p101
    %p104 = scmp.ne.s32.totalorder %s89, %s103
    %p105 = scmp.eq.s32.totalorder %s16, 0
    %p106 = por %p104, %p105
    %s107 = ssub.s32 %s10, %s17
    %p108 = scmp.eq.s32.totalorder %s107, 0
    %s110 = sadd.s32 %s109, 1
    %s111 = scalar_select %p108, %s109, %s110
    %p114 = pneg %p108
    %p115 = scmp.eq.s32.totalorder %s10, 1
    %p116 = por %p114, %p115
    %p117 = scmp.ne.s32.totalorder %s109, %s112
    %p118 = scmp.eq.s32.totalorder %s10, 0
    %p119 = por %p117, %p118
    %p120 = scmp.ne.s32.totalorder %s109, %s112
    %p121 = scmp.eq.s32.totalorder %s15, 1
    %p122 = por %p120, %p121
    %p123 = scmp.ne.s32.totalorder %s112, %s113
    %p124 = scmp.eq.s32.totalorder %s15, 0
    %p125 = por %p123, %p124
    %p126 = scmp.ne.s32.totalorder %s112, %s113
    %p127 = scmp.eq.s32.totalorder %s16, 1
    %p128 = por %p126, %p127
    %p130 = scmp.ne.s32.totalorder %s113, %s129
    %p131 = scmp.eq.s32.totalorder %s16, 0
    %p132 = por %p130, %p131
    %p133 = scmp.le.s32.totalorder 1, %s10
    %p134 = scmp.lt.s32.totalorder %s10, 3
    %p135 = pnand %p133, %p134
    %p136 = pneg %p135
    // Predicated region
    $region9: #{aspp_forward.1} parent=5 // pred_check
      _
    $region10: #{aspp_forward.1} parent=5 // pred_check_branch
      %138 = sbr.rel (%p135) target = $region12
    $region11: #{aspp_forward.1} parent=5 // pred_region
      %s139 = ssub.s32 %s10, 1
      // Predicated region
      $region13: #{aspp_forward.1} parent=11 // pred_check
        %p140 = pneg %p57
      $region14: #{aspp_forward.1} parent=11 // pred_check_branch
        %142 = sbr.rel (%p140) target = $region16
      $region15: #{aspp_forward.1} parent=11 // pred_region
        _
      $region16: #{aspp_forward.1} parent=11 // pred_fallthru
        _
      // Predicated region
      $region17: #{aspp_forward.1} parent=11 // pred_check
        %p143 = pneg %p78
      $region18: #{aspp_forward.1} parent=11 // pred_check_branch
        %145 = sbr.rel (%p143) target = $region20
      $region19: #{aspp_forward.1} parent=11 // pred_region
        _
      $region20: #{aspp_forward.1} parent=11 // pred_fallthru
        _
      // Predicated region
      $region21: #{aspp_forward.1} parent=11 // pred_check
        %p146 = pneg %p99
      $region22: #{aspp_forward.1} parent=11 // pred_check_branch
        %148 = sbr.rel (%p146) target = $region24
      $region23: #{aspp_forward.1} parent=11 // pred_region
        _
      $region24: #{aspp_forward.1} parent=11 // pred_fallthru
        _
    $region12: #{aspp_forward.1} parent=5 // pred_fallthru
      _
    %p149 = scmp.lt.s32.totalorder %s10, 2
    // Predicated region
    $region25: #{aspp_forward.1} parent=5 // pred_check
      %p150 = pneg %p149
    $region26: #{aspp_forward.1} parent=5 // pred_check_branch
      %152 = sbr.rel (%p150) target = $region28
    $region27: #{aspp_forward.1} parent=5 // pred_region
      // Predicated region
      $region29: #{aspp_forward.1} parent=27 // pred_check
        %p153 = pneg %p30
      $region30: #{aspp_forward.1} parent=27 // pred_check_branch
        %155 = sbr.rel (%p153) target = $region32
      $region31: #{aspp_forward.1} parent=27 // pred_region
        %p156 = scmp.lt.s32.totalorder %s10, 1
        %s157 = scalar_select %p156, %s10, 1
        %s158 = smul.addr %s157, 24
        %s159 = smul.addr %s158, 2
        %s160 = scalar_lea.vmem %s0, %s159
      $region32: #{aspp_forward.1} parent=27 // pred_fallthru
        _
    $region28: #{aspp_forward.1} parent=5 // pred_fallthru
      _
    %p161 = scmp.le.s32.totalorder 1, %s10
    %p162 = scmp.lt.s32.totalorder %s10, 3
    %p163 = pnand %p161, %p162
    %p164 = pneg %p163
    // Predicated region
    $region33: #{aspp_forward.1} parent=5 // pred_check
      _
    $region34: #{aspp_forward.1} parent=5 // pred_check_branch
      %166 = sbr.rel (%p163) target = $region36
    $region35: #{aspp_forward.1} parent=5 // pred_region
      %s167 = ssub.s32 %s10, 1
      %p168 = scmp.lt.s32.totalorder %s15, 1
      %s169 = scalar_select %p168, %s15, 1
      %s170 = smul.addr %s169, 24
      %s171 = smul.addr %s170, 2
      %s172 = scalar_lea.vmem %s0, %s171
      %p173 = pneg %p36
      %p174 = pneg %p33
      %p175 = pneg %p57
      %p176 = pneg %p54
      %p177 = pneg %p78
      %p178 = pneg %p75
      %p179 = pneg %p99
      %p180 = pneg %p96
      %p181 = pneg %p125
      %p182 = pneg %p122
      %p183 = scmp.lt.s32.totalorder %s15, 1
      %s184 = scalar_select %p183, %s15, 1
      %s185 = smul.addr %s184, 7
      %s186 = smul.addr %s185, 8
      %s187 = scalar_lea.vmem %s4, %s186
      %p188 = scmp.lt.s32.totalorder %s15, 1
      %s189 = scalar_select %p188, %s15, 1
      %s190 = smul.addr %s189, 24
      %s191 = smul.addr %s190, 2
      %s192 = scalar_lea.vmem %s0, %s191
      %p193 = scmp.lt.s32.totalorder %s15, 1
      %s194 = scalar_select %p193, %s15, 1
      %s195 = smul.addr %s194, 7
      %s196 = smul.addr %s195, 8
      %s197 = scalar_lea.vmem %s4, %s196
      %v199 = vld [vmem:[%s192] sm:$0xff]
      %v200 = vld [vmem:[%s192 + $0x8] sm:$0xff]
      %v201 = vld [vmem:[%s192 + $0x10] sm:$0xff]
      %v202 = vld [vmem:[%s192 + $0x18] sm:$0xff]
      %v203 = vld [vmem:[%s192 + $0x20] sm:$0xff]
      %v204 = vld [vmem:[%s192 + $0x28] sm:$0xff]
      %v208 = vcombine.high %v200, %v200
      %v210 = vunpack.c.l.s4 1983009808
      %v211 = vunpack.c.0.s8 %v210
      %v212 = vlaneseq
      %v213 = vshrl.u32 %v212, 7
      %v214 = vsub.s32 %v211, %v213
      %v215 = vrot.slane %v200, %v214
      %v217 = vunpack.c.l.s4 1983009808
      %v218 = vunpack.c.0.s8 %v217
      %v219 = vlaneseq
      %v220 = vshrl.u32 %v219, 7
      %v221 = vsub.s32 %v218, %v220
      %v222 = vrot.slane %v208, %v221
      %v223 = vcombine.high %v215, %v215
      %v224 = vcombine.high %v222, %v222
      %v225 = vcombine.high %v201, %v201
      %v227 = vunpack.c.l.s4 1983009808
      %v228 = vunpack.c.0.s8 %v227
      %v229 = vlaneseq
      %v230 = vshrl.u32 %v229, 7
      %v231 = vsub.s32 %v228, %v230
      %v232 = vrot.slane %v201, %v231
      %v234 = vunpack.c.l.s4 1983009808
      %v235 = vunpack.c.0.s8 %v234
      %v236 = vlaneseq
      %v237 = vshrl.u32 %v236, 7
      %v238 = vsub.s32 %v235, %v237
      %v239 = vrot.slane %v225, %v238
      %v240 = vcombine.high %v232, %v232
      %v241 = vcombine.high %v239, %v239
      %v243 = vunpack.c.l.s4 1983009808
      %v244 = vunpack.c.0.s8 %v243
      %v245 = vlaneseq
      %v246 = vshrl.u32 %v245, 7
      %v247 = vsub.s32 %v244, %v246
      %v248 = vrot.slane %v202, %v247
      %249 = vrot.lane.b32.xlu0 %v223, 84
      %v250 = vpop.permute.xlu0 %249
      %251 = vrot.lane.b32.xlu0 %v222, 84
      %v252 = vpop.permute.xlu0 %251
      %253 = vrot.lane.b32.xlu0 %v224, 84
      %v254 = vpop.permute.xlu0 %253
      %255 = vrot.lane.b32.xlu0 %v232, 84
      %v256 = vpop.permute.xlu0 %255
      %257 = vrot.lane.b32.xlu0 %v240, 84
      %v258 = vpop.permute.xlu0 %257
      %259 = vrot.lane.b32.xlu0 %v239, 84
      %v260 = vpop.permute.xlu0 %259
      %261 = vrot.lane.b32.xlu0 %v241, 84
      %v262 = vpop.permute.xlu0 %261
      %263 = vrot.lane.b32.xlu0 %v248, 84
      %v264 = vpop.permute.xlu0 %263
      %vm265 = vcmask 687104
      %v266 = vsel %vm265, %v250, %v252
      %v267 = vsel %vm265, %v252, %v254
      %v268 = vsel %vm265, %v254, %v256
      %v269 = vsel %vm265, %v256, %v258
      %v270 = vsel %vm265, %v258, %v260
      %v271 = vsel %vm265, %v260, %v262
      %v272 = vsel %vm265, %v262, %v264
      %v273 = vcombine.low %v200, %v200
      %v275 = vunpack.c.l.s4 1983009808
      %v276 = vunpack.c.0.s8 %v275
      %v277 = vlaneseq
      %v278 = vshrl.u32 %v277, 7
      %v279 = vsub.s32 %v276, %v278
      %v280 = vrot.slane %v273, %v279
      %v281 = vcombine.high %v280, %v280
      %v282 = vcombine.low %v201, %v201
      %v284 = vunpack.c.l.s4 1983009808
      %v285 = vunpack.c.0.s8 %v284
      %v286 = vlaneseq
      %v287 = vshrl.u32 %v286, 7
      %v288 = vsub.s32 %v285, %v287
      %v289 = vrot.slane %v282, %v288
      %v290 = vcombine.high %v289, %v289
      %v291 = vcombine.low %v202, %v202
      %v293 = vunpack.c.l.s4 1983009808
      %v294 = vunpack.c.0.s8 %v293
      %v295 = vlaneseq
      %v296 = vshrl.u32 %v295, 7
      %v297 = vsub.s32 %v294, %v296
      %v298 = vrot.slane %v291, %v297
      %299 = vrot.lane.b32.xlu0 %v281, 78
      %v300 = vpop.permute.xlu0 %299
      %301 = vrot.lane.b32.xlu0 %v215, 78
      %v302 = vpop.permute.xlu0 %301
      %303 = vrot.lane.b32.xlu0 %v223, 78
      %v304 = vpop.permute.xlu0 %303
      %305 = vrot.lane.b32.xlu0 %v289, 78
      %v306 = vpop.permute.xlu0 %305
      %307 = vrot.lane.b32.xlu0 %v290, 78
      %v308 = vpop.permute.xlu0 %307
      %309 = vrot.lane.b32.xlu0 %v232, 78
      %v310 = vpop.permute.xlu0 %309
      %311 = vrot.lane.b32.xlu0 %v240, 78
      %v312 = vpop.permute.xlu0 %311
      %313 = vrot.lane.b32.xlu0 %v298, 78
      %v314 = vpop.permute.xlu0 %313
      %vm315 = vcmask 637952
      %v316 = vsel %vm315, %v300, %v302
      %v317 = vsel %vm315, %v302, %v304
      %v318 = vsel %vm315, %v304, %v306
      %v319 = vsel %vm315, %v306, %v308
      %v320 = vsel %vm315, %v308, %v310
      %v321 = vsel %vm315, %v310, %v312
      %v322 = vsel %vm315, %v312, %v314
      %v323 = vcombine.low %v222, %v222
      %v324 = vcombine.low %v232, %v232
      %v325 = vcombine.low %v239, %v239
      %v326 = vcombine.low %v248, %v248
      %327 = vrot.lane.b32.xlu0 %v215, 72
      %v328 = vpop.permute.xlu0 %327
      %329 = vrot.lane.b32.xlu0 %v323, 72
      %v330 = vpop.permute.xlu0 %329
      %331 = vrot.lane.b32.xlu0 %v222, 72
      %v332 = vpop.permute.xlu0 %331
      %333 = vrot.lane.b32.xlu0 %v324, 72
      %v334 = vpop.permute.xlu0 %333
      %335 = vrot.lane.b32.xlu0 %v232, 72
      %v336 = vpop.permute.xlu0 %335
      %337 = vrot.lane.b32.xlu0 %v325, 72
      %v338 = vpop.permute.xlu0 %337
      %339 = vrot.lane.b32.xlu0 %v239, 72
      %v340 = vpop.permute.xlu0 %339
      %341 = vrot.lane.b32.xlu0 %v326, 72
      %v342 = vpop.permute.xlu0 %341
      %vm343 = vcmask 588800
      %v344 = vsel %vm343, %v328, %v330
      %v345 = vsel %vm343, %v330, %v332
      %v346 = vsel %vm343, %v332, %v334
      %v347 = vsel %vm343, %v334, %v336
      %v348 = vsel %vm343, %v336, %v338
      %v349 = vsel %vm343, %v338, %v340
      %v350 = vsel %vm343, %v340, %v342
      %v351 = vcombine.low %v289, %v289
      %v352 = vcombine.low %v298, %v298
      %353 = vrot.lane.b32.xlu0 %v215, 4
      %v354 = vpop.permute.xlu0 %353
      %355 = vrot.lane.b32.xlu0 %v351, 4
      %v356 = vpop.permute.xlu0 %355
      %357 = vrot.lane.b32.xlu0 %v289, 4
      %v358 = vpop.permute.xlu0 %357
      %359 = vrot.lane.b32.xlu0 %v324, 4
      %v360 = vpop.permute.xlu0 %359
      %361 = vrot.lane.b32.xlu0 %v232, 4
      %v362 = vpop.permute.xlu0 %361
      %363 = vrot.lane.b32.xlu0 %v352, 4
      %v364 = vpop.permute.xlu0 %363
      %365 = vrot.lane.b32.xlu0 %v298, 4
      %v366 = vpop.permute.xlu0 %365
      %367 = vrot.lane.b32.xlu0 %v326, 4
      %v368 = vpop.permute.xlu0 %367
      %vm369 = vcmask 31744
      %v370 = vsel %vm369, %v354, %v356
      %v371 = vsel %vm369, %v356, %v358
      %v372 = vsel %vm369, %v358, %v360
      %v373 = vsel %vm369, %v360, %v362
      %v374 = vsel %vm369, %v362, %v364
      %v375 = vsel %vm369, %v364, %v366
      %v376 = vsel %vm369, %v366, %v368
      %v377 = vcombine.high %v202, %v202
      %v379 = vunpack.c.l.s4 1983009808
      %v380 = vunpack.c.0.s8 %v379
      %v381 = vlaneseq
      %v382 = vshrl.u32 %v381, 7
      %v383 = vsub.s32 %v380, %v382
      %v384 = vrot.slane %v377, %v383
      %v385 = vcombine.high %v248, %v248
      %v386 = vcombine.high %v384, %v384
      %387 = vrot.lane.b32.xlu0 %v232, 126
      %v388 = vpop.permute.xlu0 %387
      %389 = vrot.lane.b32.xlu0 %v240, 126
      %v390 = vpop.permute.xlu0 %389
      %391 = vrot.lane.b32.xlu0 %v239, 126
      %v392 = vpop.permute.xlu0 %391
      %393 = vrot.lane.b32.xlu0 %v241, 126
      %v394 = vpop.permute.xlu0 %393
      %395 = vrot.lane.b32.xlu0 %v248, 126
      %v396 = vpop.permute.xlu0 %395
      %397 = vrot.lane.b32.xlu0 %v385, 126
      %v398 = vpop.permute.xlu0 %397
      %399 = vrot.lane.b32.xlu0 %v384, 126
      %v400 = vpop.permute.xlu0 %399
      %401 = vrot.lane.b32.xlu0 %v386, 126
      %v402 = vpop.permute.xlu0 %401
      %vm403 = vcmask 1031168
      %v404 = vsel %vm403, %v388, %v390
      %v405 = vsel %vm403, %v390, %v392
      %v406 = vsel %vm403, %v392, %v394
      %v407 = vsel %vm403, %v394, %v396
      %v408 = vsel %vm403, %v396, %v398
      %v409 = vsel %vm403, %v398, %v400
      %v410 = vsel %vm403, %v400, %v402
      %v411 = vcombine.high %v298, %v298
      %412 = vrot.lane.b32.xlu0 %v289, 120
      %v413 = vpop.permute.xlu0 %412
      %414 = vrot.lane.b32.xlu0 %v290, 120
      %v415 = vpop.permute.xlu0 %414
      %416 = vrot.lane.b32.xlu0 %v232, 120
      %v417 = vpop.permute.xlu0 %416
      %418 = vrot.lane.b32.xlu0 %v240, 120
      %v419 = vpop.permute.xlu0 %418
      %420 = vrot.lane.b32.xlu0 %v298, 120
      %v421 = vpop.permute.xlu0 %420
      %422 = vrot.lane.b32.xlu0 %v411, 120
      %v423 = vpop.permute.xlu0 %422
      %424 = vrot.lane.b32.xlu0 %v248, 120
      %v425 = vpop.permute.xlu0 %424
      %426 = vrot.lane.b32.xlu0 %v385, 120
      %v427 = vpop.permute.xlu0 %426
      %vm428 = vcmask 982016
      %v429 = vsel %vm428, %v413, %v415
      %v430 = vsel %vm428, %v415, %v417
      %v431 = vsel %vm428, %v417, %v419
      %v432 = vsel %vm428, %v419, %v421
      %v433 = vsel %vm428, %v421, %v423
      %v434 = vsel %vm428, %v423, %v425
      %v435 = vsel %vm428, %v425, %v427
      %v437 = vcombine.low %v384, %v384
      %v439 = vunpack.c.l.s4 1983009808
      %v440 = vunpack.c.0.s8 %v439
      %v441 = vlaneseq
      %v442 = vshrl.u32 %v441, 7
      %v443 = vsub.s32 %v440, %v442
      %v444 = vrot.slane %v203, %v443
      %v445 = vcombine.low %v444, %v444
      %446 = vrot.lane.b32.xlu0 %v325, 52
      %v447 = vpop.permute.xlu0 %446
      %448 = vrot.lane.b32.xlu0 %v239, 52
      %v449 = vpop.permute.xlu0 %448
      %450 = vrot.lane.b32.xlu0 %v326, 52
      %v451 = vpop.permute.xlu0 %450
      %452 = vrot.lane.b32.xlu0 %v248, 52
      %v453 = vpop.permute.xlu0 %452
      %454 = vrot.lane.b32.xlu0 %v437, 52
      %v455 = vpop.permute.xlu0 %454
      %456 = vrot.lane.b32.xlu0 %v384, 52
      %v457 = vpop.permute.xlu0 %456
      %458 = vrot.lane.b32.xlu0 %v445, 52
      %v459 = vpop.permute.xlu0 %458
      %460 = vrot.lane.b32.xlu0 %v444, 52
      %v461 = vpop.permute.xlu0 %460
      %vm462 = vcmask 424960
      %v463 = vsel %vm462, %v447, %v449
      %v464 = vsel %vm462, %v449, %v451
      %v465 = vsel %vm462, %v451, %v453
      %v466 = vsel %vm462, %v453, %v455
      %v467 = vsel %vm462, %v455, %v457
      %v468 = vsel %vm462, %v457, %v459
      %v469 = vsel %vm462, %v459, %v461
      %v470 = vcombine.low %v203, %v203
      %v472 = vunpack.c.l.s4 1983009808
      %v473 = vunpack.c.0.s8 %v472
      %v474 = vlaneseq
      %v475 = vshrl.u32 %v474, 7
      %v476 = vsub.s32 %v473, %v475
      %v477 = vrot.slane %v470, %v476
      %v478 = vcombine.low %v477, %v477
      %479 = vrot.lane.b32.xlu0 %v324, 46
      %v480 = vpop.permute.xlu0 %479
      %481 = vrot.lane.b32.xlu0 %v232, 46
      %v482 = vpop.permute.xlu0 %481
      %483 = vrot.lane.b32.xlu0 %v352, 46
      %v484 = vpop.permute.xlu0 %483
      %485 = vrot.lane.b32.xlu0 %v298, 46
      %v486 = vpop.permute.xlu0 %485
      %487 = vrot.lane.b32.xlu0 %v326, 46
      %v488 = vpop.permute.xlu0 %487
      %489 = vrot.lane.b32.xlu0 %v248, 46
      %v490 = vpop.permute.xlu0 %489
      %491 = vrot.lane.b32.xlu0 %v478, 46
      %v492 = vpop.permute.xlu0 %491
      %493 = vrot.lane.b32.xlu0 %v477, 46
      %v494 = vpop.permute.xlu0 %493
      %vm495 = vcmask 375808
      %v496 = vsel %vm495, %v480, %v482
      %v497 = vsel %vm495, %v482, %v484
      %v498 = vsel %vm495, %v484, %v486
      %v499 = vsel %vm495, %v486, %v488
      %v500 = vsel %vm495, %v488, %v490
      %v501 = vsel %vm495, %v490, %v492
      %v502 = vsel %vm495, %v492, %v494
      %v503 = vcombine.high %v444, %v444
      %504 = vrot.lane.b32.xlu0 %v239, 40
      %v505 = vpop.permute.xlu0 %504
      %506 = vrot.lane.b32.xlu0 %v241, 40
      %v507 = vpop.permute.xlu0 %506
      %508 = vrot.lane.b32.xlu0 %v248, 40
      %v509 = vpop.permute.xlu0 %508
      %510 = vrot.lane.b32.xlu0 %v385, 40
      %v511 = vpop.permute.xlu0 %510
      %512 = vrot.lane.b32.xlu0 %v384, 40
      %v513 = vpop.permute.xlu0 %512
      %514 = vrot.lane.b32.xlu0 %v386, 40
      %v515 = vpop.permute.xlu0 %514
      %516 = vrot.lane.b32.xlu0 %v444, 40
      %v517 = vpop.permute.xlu0 %516
      %518 = vrot.lane.b32.xlu0 %v503, 40
      %v519 = vpop.permute.xlu0 %518
      %vm520 = vcmask 326656
      %v521 = vsel %vm520, %v505, %v507
      %v522 = vsel %vm520, %v507, %v509
      %v523 = vsel %vm520, %v509, %v511
      %v524 = vsel %vm520, %v511, %v513
      %v525 = vsel %vm520, %v513, %v515
      %v526 = vsel %vm520, %v515, %v517
      %v527 = vsel %vm520, %v517, %v519
      %vm528 = vcmask 1041408
      %v531 = vsel %vm528, %v266, %v316
      %v534 = vsel %vm528, %v267, %v317
      %v537 = vsel %vm528, %v268, %v318
      %v540 = vsel %vm528, %v269, %v319
      %v543 = vsel %vm528, %v270, %v320
      %v546 = vsel %vm528, %v271, %v321
      %v549 = vsel %vm528, %v272, %v322
      %vm550 = vcmask 1043456
      %v552 = vsel %vm550, %v531, %v344
      %v554 = vsel %vm550, %v534, %v345
      %v556 = vsel %vm550, %v537, %v346
      %v558 = vsel %vm550, %v540, %v347
      %v560 = vsel %vm550, %v543, %v348
      %v562 = vsel %vm550, %v546, %v349
      %v564 = vsel %vm550, %v549, %v350
      %vm565 = vcmask 1045504
      %v567 = vsel %vm565, %v552, %v370
      %v570 = vsel %vm565, %v554, %v371
      %v573 = vsel %vm565, %v556, %v372
      %v576 = vsel %vm565, %v558, %v373
      %v579 = vsel %vm565, %v560, %v374
      %v582 = vsel %vm565, %v562, %v375
      %v585 = vsel %vm565, %v564, %v376
      %v589 = vsel %vm528, %v404, %v429
      %v592 = vsel %vm528, %v405, %v430
      %v595 = vsel %vm528, %v406, %v431
      %v598 = vsel %vm528, %v407, %v432
      %v601 = vsel %vm528, %v408, %v433
      %v604 = vsel %vm528, %v409, %v434
      %v607 = vsel %vm528, %v410, %v435
      %v609 = vsel %vm550, %v589, %v463
      %v611 = vsel %vm550, %v592, %v464
      %v613 = vsel %vm550, %v595, %v465
      %v615 = vsel %vm550, %v598, %v466
      %v617 = vsel %vm550, %v601, %v467
      %v619 = vsel %vm550, %v604, %v468
      %v621 = vsel %vm550, %v607, %v469
      %v623 = vsel %vm565, %v609, %v496
      %v626 = vsel %vm565, %v611, %v497
      %v629 = vsel %vm565, %v613, %v498
      %v632 = vsel %vm565, %v615, %v499
      %v635 = vsel %vm565, %v617, %v500
      %v638 = vsel %vm565, %v619, %v501
      %v641 = vsel %vm565, %v621, %v502
      %v643 = vld [vmem:[%s1] sm:$0xf]
      %vm644 = vcmask 293888
      %v646 = vsel %vm644, %v643, 0
      %v649 = vsel %vm528, %v521, 0
      %v652 = vsel %vm528, %v522, 0
      %v655 = vsel %vm528, %v523, 0
      %v658 = vsel %vm528, %v524, 0
      %v661 = vsel %vm528, %v525, 0
      %v664 = vsel %vm528, %v526, 0
      %v667 = vsel %vm528, %v527, 0
      %669 = vmatprep.subr.bf16.mxu0 %v570
      %670 = vmatpush1.bf16.msra.mxu0 %v567
      %671 = vmatprep.subr.bf16.mxu0 %v626
      %672 = vmatpush1.bf16.msra.mxu0 %v623
      %673 = vmatprep.subr.bf16.mxu0 %v652
      %674 = vmatpush1.bf16.msra.mxu0 %v649
      %675 = vmatprep.subr.bf16.mxu0 0
      %676 = vmatpush1.bf16.msra.mxu0 0
      %677 = vmatprep.subr.bf16.mxu0 0
      %678 = vmatpush1.bf16.msra.mxu0 0
      %679 = vmatprep.subr.bf16.mxu0 0
      %680 = vmatpush1.bf16.msra.mxu0 0
      %681 = vmatprep.subr.bf16.mxu0 0
      %682 = vmatpush1.bf16.msra.mxu0 0
      %683 = vmatprep.subr.bf16.mxu0 0
      %684 = vmatpush1.bf16.msra.mxu0 0
      %685 = vmatprep.subr.bf16.mxu0 0
      %686 = vmatpush1.bf16.msra.mxu0 0
      %687 = vmatprep.subr.bf16.mxu0 0
      %688 = vmatpush1.bf16.msra.mxu0 0
      %689 = vmatprep.subr.bf16.mxu0 0
      %690 = vmatpush1.bf16.msra.mxu0 0
      %691 = vmatprep.subr.bf16.mxu0 0
      %692 = vmatpush1.bf16.msra.mxu0 0
      %693 = vmatprep.subr.bf16.mxu0 0
      %694 = vmatpush1.bf16.msra.mxu0 0
      %695 = vmatprep.subr.bf16.mxu0 0
      %696 = vmatpush1.bf16.msra.mxu0 0
      %697 = vmatprep.subr.bf16.mxu0 0
      %698 = vmatpush1.bf16.msra.mxu0 0
      %699 = vmatprep.subr.bf16.mxu0 0
      %700 = vmatpush1.bf16.msra.mxu0 0
      %701 = vmatprep.mubr.bf16.mxu0 0
      %702 = vmatmul.mubr.bf16.gmra.mrb[0].mxu0 %v646
      %v703 = vpop.f32.mrb[0].mxu0
      %v704 = vadd.f32 0.0, %v703
      %v705 = vpop.f32.mrb[0].mxu0
      %v706 = vadd.f32 0.0, %v705
      %v707 = vpop.f32.mrb[0].mxu0
      %v708 = vpop.f32.mrb[0].mxu0
      %709 = vdwg.mxu0
      %710 = vmatprep.subr.bf16.mxu0 %v576
      %711 = vmatpush1.bf16.msra.mxu0 %v573
      %712 = vmatprep.subr.bf16.mxu0 %v632
      %713 = vmatpush1.bf16.msra.mxu0 %v629
      %714 = vmatprep.subr.bf16.mxu0 %v658
      %715 = vmatpush1.bf16.msra.mxu0 %v655
      %716 = vmatprep.subr.bf16.mxu0 0
      %717 = vmatpush1.bf16.msra.mxu0 0
      %718 = vmatprep.subr.bf16.mxu0 0
      %719 = vmatpush1.bf16.msra.mxu0 0
      %720 = vmatprep.subr.bf16.mxu0 0
      %721 = vmatpush1.bf16.msra.mxu0 0
      %722 = vmatprep.subr.bf16.mxu0 0
      %723 = vmatpush1.bf16.msra.mxu0 0
      %724 = vmatprep.subr.bf16.mxu0 0
      %725 = vmatpush1.bf16.msra.mxu0 0
      %726 = vmatprep.subr.bf16.mxu0 0
      %727 = vmatpush1.bf16.msra.mxu0 0
      %728 = vmatprep.subr.bf16.mxu0 0
      %729 = vmatpush1.bf16.msra.mxu0 0
      %730 = vmatprep.subr.bf16.mxu0 0
      %731 = vmatpush1.bf16.msra.mxu0 0
      %732 = vmatprep.subr.bf16.mxu0 0
      %733 = vmatpush1.bf16.msra.mxu0 0
      %734 = vmatprep.subr.bf16.mxu0 0
      %735 = vmatpush1.bf16.msra.mxu0 0
      %736 = vmatprep.subr.bf16.mxu0 0
      %737 = vmatpush1.bf16.msra.mxu0 0
      %738 = vmatprep.subr.bf16.mxu0 0
      %739 = vmatpush1.bf16.msra.mxu0 0
      %740 = vmatprep.subr.bf16.mxu0 0
      %741 = vmatpush1.bf16.msra.mxu0 0
      %742 = vmatprep.mubr.bf16.mxu0 0
      %743 = vmatmul.mubr.bf16.gmra.mrb[0].mxu0 %v646
      %v744 = vpop.f32.mrb[0].mxu0
      %v745 = vadd.f32 0.0, %v744
      %v746 = vpop.f32.mrb[0].mxu0
      %v747 = vadd.f32 0.0, %v746
      %v748 = vpop.f32.mrb[0].mxu0
      %v749 = vpop.f32.mrb[0].mxu0
      %750 = vdwg.mxu0
      %751 = vmatprep.subr.bf16.mxu0 %v582
      %752 = vmatpush1.bf16.msra.mxu0 %v579
      %753 = vmatprep.subr.bf16.mxu0 %v638
      %754 = vmatpush1.bf16.msra.mxu0 %v635
      %755 = vmatprep.subr.bf16.mxu0 %v664
      %756 = vmatpush1.bf16.msra.mxu0 %v661
      %757 = vmatprep.subr.bf16.mxu0 0
      %758 = vmatpush1.bf16.msra.mxu0 0
      %759 = vmatprep.subr.bf16.mxu0 0
      %760 = vmatpush1.bf16.msra.mxu0 0
      %761 = vmatprep.subr.bf16.mxu0 0
      %762 = vmatpush1.bf16.msra.mxu0 0
      %763 = vmatprep.subr.bf16.mxu0 0
      %764 = vmatpush1.bf16.msra.mxu0 0
      %765 = vmatprep.subr.bf16.mxu0 0
      %766 = vmatpush1.bf16.msra.mxu0 0
      %767 = vmatprep.subr.bf16.mxu0 0
      %768 = vmatpush1.bf16.msra.mxu0 0
      %769 = vmatprep.subr.bf16.mxu0 0
      %770 = vmatpush1.bf16.msra.mxu0 0
      %771 = vmatprep.subr.bf16.mxu0 0
      %772 = vmatpush1.bf16.msra.mxu0 0
      %773 = vmatprep.subr.bf16.mxu0 0
      %774 = vmatpush1.bf16.msra.mxu0 0
      %775 = vmatprep.subr.bf16.mxu0 0
      %776 = vmatpush1.bf16.msra.mxu0 0
      %777 = vmatprep.subr.bf16.mxu0 0
      %778 = vmatpush1.bf16.msra.mxu0 0
      %779 = vmatprep.subr.bf16.mxu0 0
      %780 = vmatpush1.bf16.msra.mxu0 0
      %781 = vmatprep.subr.bf16.mxu0 0
      %782 = vmatpush1.bf16.msra.mxu0 0
      %783 = vmatprep.mubr.bf16.mxu0 0
      %784 = vmatmul.mubr.bf16.gmra.mrb[0].mxu0 %v646
      %v785 = vpop.f32.mrb[0].mxu0
      %v786 = vadd.f32 0.0, %v785
      %v787 = vpop.f32.mrb[0].mxu0
      %v788 = vadd.f32 0.0, %v787
      %v789 = vpop.f32.mrb[0].mxu0
      %v790 = vpop.f32.mrb[0].mxu0
      %791 = vdwg.mxu0
      %792 = vmatprep.subr.bf16.mxu0 0
      %793 = vmatpush1.bf16.msra.mxu0 %v585
      %794 = vmatprep.subr.bf16.mxu0 0
      %795 = vmatpush1.bf16.msra.mxu0 %v641
      %796 = vmatprep.subr.bf16.mxu0 0
      %797 = vmatpush1.bf16.msra.mxu0 %v667
      %798 = vmatprep.subr.bf16.mxu0 0
      %799 = vmatpush1.bf16.msra.mxu0 0
      %800 = vmatprep.subr.bf16.mxu0 0
      %801 = vmatpush1.bf16.msra.mxu0 0
      %802 = vmatprep.subr.bf16.mxu0 0
      %803 = vmatpush1.bf16.msra.mxu0 0
      %804 = vmatprep.subr.bf16.mxu0 0
      %805 = vmatpush1.bf16.msra.mxu0 0
      %806 = vmatprep.subr.bf16.mxu0 0
      %807 = vmatpush1.bf16.msra.mxu0 0
      %808 = vmatprep.subr.bf16.mxu0 0
      %809 = vmatpush1.bf16.msra.mxu0 0
      %810 = vmatprep.subr.bf16.mxu0 0
      %811 = vmatpush1.bf16.msra.mxu0 0
      %812 = vmatprep.subr.bf16.mxu0 0
      %813 = vmatpush1.bf16.msra.mxu0 0
      %814 = vmatprep.subr.bf16.mxu0 0
      %815 = vmatpush1.bf16.msra.mxu0 0
      %816 = vmatprep.subr.bf16.mxu0 0
      %817 = vmatpush1.bf16.msra.mxu0 0
      %818 = vmatprep.subr.bf16.mxu0 0
      %819 = vmatpush1.bf16.msra.mxu0 0
      %820 = vmatprep.subr.bf16.mxu0 0
      %821 = vmatpush1.bf16.msra.mxu0 0
      %822 = vmatprep.subr.bf16.mxu0 0
      %823 = vmatpush1.bf16.msra.mxu0 0
      %824 = vmatprep.mubr.bf16.mxu0 0
      %825 = vmatmul.mubr.bf16.gmra.mrb[0].mxu0 %v646
      %v826 = vpop.f32.mrb[0].mxu0
      %v827 = vadd.f32 0.0, %v826
      %v828 = vpop.f32.mrb[0].mxu0
      %v829 = vpop.f32.mrb[0].mxu0
      %v830 = vpop.f32.mrb[0].mxu0
      %831 = vdwg.mxu0
      %v832 = vmin.f32 %v704, 20.0
      %v833 = vmin.f32 %v706, 20.0
      %v834 = vmin.f32 %v745, 20.0
      %v835 = vmin.f32 %v747, 20.0
      %v836 = vmin.f32 %v786, 20.0
      %v837 = vmin.f32 %v788, 20.0
      %v838 = vmin.f32 %v827, 20.0
      %v839 = vmul.f32 %v832, 1.442695
      %v840 = vpow.pop %v839
      %v841 = vmul.f32 %v833, 1.442695
      %v842 = vpow.pop %v841
      %v843 = vmul.f32 %v834, 1.442695
      %v844 = vpow.pop %v843
      %v845 = vmul.f32 %v835, 1.442695
      %v846 = vpow.pop %v845
      %v847 = vmul.f32 %v836, 1.442695
      %v848 = vpow.pop %v847
      %v849 = vmul.f32 %v837, 1.442695
      %v850 = vpow.pop %v849
      %v851 = vmul.f32 %v838, 1.442695
      %v852 = vpow.pop %v851
      %v853 = vadd.f32 %v840, 1.0
      %v854 = vadd.f32 %v842, 1.0
      %v855 = vadd.f32 %v844, 1.0
      %v856 = vadd.f32 %v846, 1.0
      %v857 = vadd.f32 %v848, 1.0
      %v858 = vadd.f32 %v850, 1.0
      %v859 = vadd.f32 %v852, 1.0
      %v860 = vmul.f32 %v853, %v853
      %v861 = vmul.f32 %v854, %v854
      %v862 = vmul.f32 %v855, %v855
      %v863 = vmul.f32 %v856, %v856
      %v864 = vmul.f32 %v857, %v857
      %v865 = vmul.f32 %v858, %v858
      %v866 = vmul.f32 %v859, %v859
      %v867 = vsub.f32 %v860, 1.0
      %v868 = vsub.f32 %v861, 1.0
      %v869 = vsub.f32 %v862, 1.0
      %v870 = vsub.f32 %v863, 1.0
      %v871 = vsub.f32 %v864, 1.0
      %v872 = vsub.f32 %v865, 1.0
      %v873 = vsub.f32 %v866, 1.0
      %v874 = vmul.f32 %v704, %v867
      %v875 = vmul.f32 %v706, %v868
      %v876 = vmul.f32 %v745, %v869
      %v877 = vmul.f32 %v747, %v870
      %v878 = vmul.f32 %v786, %v871
      %v879 = vmul.f32 %v788, %v872
      %v880 = vmul.f32 %v827, %v873
      %v881 = vadd.f32 %v860, 1.0
      %v882 = vadd.f32 %v861, 1.0
      %v883 = vadd.f32 %v862, 1.0
      %v884 = vadd.f32 %v863, 1.0
      %v885 = vadd.f32 %v864, 1.0
      %v886 = vadd.f32 %v865, 1.0
      %v887 = vadd.f32 %v866, 1.0
      %v888 = vrcp.pop %v881
      %v889 = vrcp.pop %v882
      %v890 = vrcp.pop %v883
      %v891 = vrcp.pop %v884
      %v892 = vrcp.pop %v885
      %v893 = vrcp.pop %v886
      %v894 = vrcp.pop %v887
      %v895 = vmul.f32 %v874, %v888
      %v896 = vmul.f32 %v875, %v889
      %v897 = vmul.f32 %v876, %v890
      %v898 = vmul.f32 %v877, %v891
      %v899 = vmul.f32 %v878, %v892
      %v900 = vmul.f32 %v879, %v893
      %v901 = vmul.f32 %v880, %v894
      %vm902 = vcmp.gt.f32.partialorder %v704, 20.0
      %vm903 = vcmp.gt.f32.partialorder %v706, 20.0
      %vm904 = vcmp.gt.f32.partialorder %v745, 20.0
      %vm905 = vcmp.gt.f32.partialorder %v747, 20.0
      %vm906 = vcmp.gt.f32.partialorder %v786, 20.0
      %vm907 = vcmp.gt.f32.partialorder %v788, 20.0
      %vm908 = vcmp.gt.f32.partialorder %v827, 20.0
      %v909 = vsel %vm902, %v704, %v895
      %v910 = vsel %vm903, %v706, %v896
      %v911 = vsel %vm904, %v745, %v897
      %v912 = vsel %vm905, %v747, %v898
      %v913 = vsel %vm906, %v786, %v899
      %v914 = vsel %vm907, %v788, %v900
      %v915 = vsel %vm908, %v827, %v901
      %v916 = vpack.c.bf16 %v909, %v909
      %v917 = vpack.c.bf16 %v910, %v910
      %v918 = vpack.c.bf16 %v911, %v911
      %v919 = vpack.c.bf16 %v912, %v912
      %v920 = vpack.c.bf16 %v913, %v913
      %v921 = vpack.c.bf16 %v914, %v914
      %v922 = vpack.c.bf16 %v915, %v915
      %v924 = vcombine.high %v199, %v199
      %v926 = vunpack.c.l.s4 1983009808
      %v927 = vunpack.c.0.s8 %v926
      %v928 = vlaneseq
      %v929 = vshrl.u32 %v928, 7
      %v930 = vsub.s32 %v927, %v929
      %v931 = vrot.slane %v199, %v930
      %v933 = vunpack.c.l.s4 1983009808
      %v934 = vunpack.c.0.s8 %v933
      %v935 = vlaneseq
      %v936 = vshrl.u32 %v935, 7
      %v937 = vsub.s32 %v934, %v936
      %v938 = vrot.slane %v924, %v937
      %v939 = vcombine.high %v938, %v938
      %940 = vrot.lane.b32.xlu0 %v938, 42
      %v941 = vpop.permute.xlu0 %940
      %942 = vrot.lane.b32.xlu0 %v939, 42
      %v943 = vpop.permute.xlu0 %942
      %944 = vrot.lane.b32.xlu0 %v215, 42
      %v945 = vpop.permute.xlu0 %944
      %946 = vrot.lane.b32.xlu0 %v223, 42
      %v947 = vpop.permute.xlu0 %946
      %948 = vrot.lane.b32.xlu0 %v222, 42
      %v949 = vpop.permute.xlu0 %948
      %950 = vrot.lane.b32.xlu0 %v224, 42
      %v951 = vpop.permute.xlu0 %950
      %952 = vrot.lane.b32.xlu0 %v232, 42
      %v953 = vpop.permute.xlu0 %952
      %954 = vrot.lane.b32.xlu0 %v240, 42
      %v955 = vpop.permute.xlu0 %954
      %vm956 = vcmask 343040
      %v957 = vsel %vm956, %v941, %v943
      %v958 = vsel %vm956, %v943, %v945
      %v959 = vsel %vm956, %v945, %v947
      %v960 = vsel %vm956, %v947, %v949
      %v961 = vsel %vm956, %v949, %v951
      %v962 = vsel %vm956, %v951, %v953
      %v963 = vsel %vm956, %v953, %v955
      %v964 = vcombine.high %v931, %v931
      %965 = vrot.lane.b32.xlu0 %v931, 30
      %v966 = vpop.permute.xlu0 %965
      %967 = vrot.lane.b32.xlu0 %v964, 30
      %v968 = vpop.permute.xlu0 %967
      %969 = vrot.lane.b32.xlu0 %v280, 30
      %v970 = vpop.permute.xlu0 %969
      %971 = vrot.lane.b32.xlu0 %v281, 30
      %v972 = vpop.permute.xlu0 %971
      %973 = vrot.lane.b32.xlu0 %v215, 30
      %v974 = vpop.permute.xlu0 %973
      %975 = vrot.lane.b32.xlu0 %v223, 30
      %v976 = vpop.permute.xlu0 %975
      %977 = vrot.lane.b32.xlu0 %v289, 30
      %v978 = vpop.permute.xlu0 %977
      %979 = vrot.lane.b32.xlu0 %v290, 30
      %v980 = vpop.permute.xlu0 %979
      %vm981 = vcmask 244736
      %v982 = vsel %vm981, %v966, %v968
      %v983 = vsel %vm981, %v968, %v970
      %v984 = vsel %vm981, %v970, %v972
      %v985 = vsel %vm981, %v972, %v974
      %v986 = vsel %vm981, %v974, %v976
      %v987 = vsel %vm981, %v976, %v978
      %v988 = vsel %vm981, %v978, %v980
      %v989 = vcombine.low %v938, %v938
      %v990 = vcombine.low %v215, %v215
      %991 = vrot.lane.b32.xlu0 %v989, 18
      %v992 = vpop.permute.xlu0 %991
      %993 = vrot.lane.b32.xlu0 %v938, 18
      %v994 = vpop.permute.xlu0 %993
      %995 = vrot.lane.b32.xlu0 %v990, 18
      %v996 = vpop.permute.xlu0 %995
      %997 = vrot.lane.b32.xlu0 %v215, 18
      %v998 = vpop.permute.xlu0 %997
      %999 = vrot.lane.b32.xlu0 %v323, 18
      %v1000 = vpop.permute.xlu0 %999
      %1001 = vrot.lane.b32.xlu0 %v222, 18
      %v1002 = vpop.permute.xlu0 %1001
      %1003 = vrot.lane.b32.xlu0 %v324, 18
      %v1004 = vpop.permute.xlu0 %1003
      %1005 = vrot.lane.b32.xlu0 %v232, 18
      %v1006 = vpop.permute.xlu0 %1005
      %vm1007 = vcmask 146432
      %v1008 = vsel %vm1007, %v992, %v994
      %v1009 = vsel %vm1007, %v994, %v996
      %v1010 = vsel %vm1007, %v996, %v998
      %v1011 = vsel %vm1007, %v998, %v1000
      %v1012 = vsel %vm1007, %v1000, %v1002
      %v1013 = vsel %vm1007, %v1002, %v1004
      %v1014 = vsel %vm1007, %v1004, %v1006
      %1015 = vrot.lane.b32.xlu0 %v215, 10
      %v1016 = vpop.permute.xlu0 %1015
      %1017 = vrot.lane.b32.xlu0 %v351, 10
      %v1018 = vpop.permute.xlu0 %1017
      %1019 = vrot.lane.b32.xlu0 %v289, 10
      %v1020 = vpop.permute.xlu0 %1019
      %1021 = vrot.lane.b32.xlu0 %v324, 10
      %v1022 = vpop.permute.xlu0 %1021
      %1023 = vrot.lane.b32.xlu0 %v232, 10
      %v1024 = vpop.permute.xlu0 %1023
      %1025 = vrot.lane.b32.xlu0 %v352, 10
      %v1026 = vpop.permute.xlu0 %1025
      %1027 = vrot.lane.b32.xlu0 %v298, 10
      %v1028 = vpop.permute.xlu0 %1027
      %1029 = vrot.lane.b32.xlu0 %v326, 10
      %v1030 = vpop.permute.xlu0 %1029
      %vm1031 = vcmask 80896
      %v1032 = vsel %vm1031, %v1016, %v1018
      %v1033 = vsel %vm1031, %v1018, %v1020
      %v1034 = vsel %vm1031, %v1020, %v1022
      %v1035 = vsel %vm1031, %v1022, %v1024
      %v1036 = vsel %vm1031, %v1024, %v1026
      %v1037 = vsel %vm1031, %v1026, %v1028
      %v1038 = vsel %vm1031, %v1028, %v1030
      %1039 = vrot.lane.b32.xlu0 %v289, 114
      %v1040 = vpop.permute.xlu0 %1039
      %1041 = vrot.lane.b32.xlu0 %v290, 114
      %v1042 = vpop.permute.xlu0 %1041
      %1043 = vrot.lane.b32.xlu0 %v232, 114
      %v1044 = vpop.permute.xlu0 %1043
      %1045 = vrot.lane.b32.xlu0 %v240, 114
      %v1046 = vpop.permute.xlu0 %1045
      %1047 = vrot.lane.b32.xlu0 %v298, 114
      %v1048 = vpop.permute.xlu0 %1047
      %1049 = vrot.lane.b32.xlu0 %v411, 114
      %v1050 = vpop.permute.xlu0 %1049
      %1051 = vrot.lane.b32.xlu0 %v248, 114
      %v1052 = vpop.permute.xlu0 %1051
      %1053 = vrot.lane.b32.xlu0 %v385, 114
      %v1054 = vpop.permute.xlu0 %1053
      %vm1055 = vcmask 932864
      %v1056 = vsel %vm1055, %v1040, %v1042
      %v1057 = vsel %vm1055, %v1042, %v1044
      %v1058 = vsel %vm1055, %v1044, %v1046
      %v1059 = vsel %vm1055, %v1046, %v1048
      %v1060 = vsel %vm1055, %v1048, %v1050
      %v1061 = vsel %vm1055, %v1050, %v1052
      %v1062 = vsel %vm1055, %v1052, %v1054
      %v1064 = vcombine.high %v203, %v203
      %v1066 = vunpack.c.l.s4 1983009808
      %v1067 = vunpack.c.0.s8 %v1066
      %v1068 = vlaneseq
      %v1069 = vshrl.u32 %v1068, 7
      %v1070 = vsub.s32 %v1067, %v1069
      %v1071 = vrot.slane %v1064, %v1070
      %v1072 = vcombine.low %v1071, %v1071
      %v1074 = vunpack.c.l.s4 1983009808
      %v1075 = vunpack.c.0.s8 %v1074
      %v1076 = vlaneseq
      %v1077 = vshrl.u32 %v1076, 7
      %v1078 = vsub.s32 %v1075, %v1077
      %v1079 = vrot.slane %v204, %v1078
      %v1080 = vcombine.low %v1079, %v1079
      %1081 = vrot.lane.b32.xlu0 %v248, 106
      %v1082 = vpop.permute.xlu0 %1081
      %1083 = vrot.lane.b32.xlu0 %v437, 106
      %v1084 = vpop.permute.xlu0 %1083
      %1085 = vrot.lane.b32.xlu0 %v384, 106
      %v1086 = vpop.permute.xlu0 %1085
      %1087 = vrot.lane.b32.xlu0 %v445, 106
      %v1088 = vpop.permute.xlu0 %1087
      %1089 = vrot.lane.b32.xlu0 %v444, 106
      %v1090 = vpop.permute.xlu0 %1089
      %1091 = vrot.lane.b32.xlu0 %v1072, 106
      %v1092 = vpop.permute.xlu0 %1091
      %1093 = vrot.lane.b32.xlu0 %v1071, 106
      %v1094 = vpop.permute.xlu0 %1093
      %1095 = vrot.lane.b32.xlu0 %v1080, 106
      %v1096 = vpop.permute.xlu0 %1095
      %vm1097 = vcmask 867328
      %v1098 = vsel %vm1097, %v1082, %v1084
      %v1099 = vsel %vm1097, %v1084, %v1086
      %v1100 = vsel %vm1097, %v1086, %v1088
      %v1101 = vsel %vm1097, %v1088, %v1090
      %v1102 = vsel %vm1097, %v1090, %v1092
      %v1103 = vsel %vm1097, %v1092, %v1094
      %v1104 = vsel %vm1097, %v1094, %v1096
      %v1105 = vcombine.low %v204, %v204
      %v1107 = vunpack.c.l.s4 1983009808
      %v1108 = vunpack.c.0.s8 %v1107
      %v1109 = vlaneseq
      %v1110 = vshrl.u32 %v1109, 7
      %v1111 = vsub.s32 %v1108, %v1110
      %v1112 = vrot.slane %v1105, %v1111
      %v1113 = vcombine.low %v1112, %v1112
      %1114 = vrot.lane.b32.xlu0 %v298, 94
      %v1115 = vpop.permute.xlu0 %1114
      %1116 = vrot.lane.b32.xlu0 %v326, 94
      %v1117 = vpop.permute.xlu0 %1116
      %1118 = vrot.lane.b32.xlu0 %v248, 94
      %v1119 = vpop.permute.xlu0 %1118
      %1120 = vrot.lane.b32.xlu0 %v478, 94
      %v1121 = vpop.permute.xlu0 %1120
      %1122 = vrot.lane.b32.xlu0 %v477, 94
      %v1123 = vpop.permute.xlu0 %1122
      %1124 = vrot.lane.b32.xlu0 %v445, 94
      %v1125 = vpop.permute.xlu0 %1124
      %1126 = vrot.lane.b32.xlu0 %v444, 94
      %v1127 = vpop.permute.xlu0 %1126
      %1128 = vrot.lane.b32.xlu0 %v1113, 94
      %v1129 = vpop.permute.xlu0 %1128
      %vm1130 = vcmask 769024
      %v1131 = vsel %vm1130, %v1115, %v1117
      %v1132 = vsel %vm1130, %v1117, %v1119
      %v1133 = vsel %vm1130, %v1119, %v1121
      %v1134 = vsel %vm1130, %v1121, %v1123
      %v1135 = vsel %vm1130, %v1123, %v1125
      %v1136 = vsel %vm1130, %v1125, %v1127
      %v1137 = vsel %vm1130, %v1127, %v1129
      %v1138 = vcombine.high %v1071, %v1071
      %1139 = vrot.lane.b32.xlu0 %v385, 82
      %v1140 = vpop.permute.xlu0 %1139
      %1141 = vrot.lane.b32.xlu0 %v384, 82
      %v1142 = vpop.permute.xlu0 %1141
      %1143 = vrot.lane.b32.xlu0 %v386, 82
      %v1144 = vpop.permute.xlu0 %1143
      %1145 = vrot.lane.b32.xlu0 %v444, 82
      %v1146 = vpop.permute.xlu0 %1145
      %1147 = vrot.lane.b32.xlu0 %v503, 82
      %v1148 = vpop.permute.xlu0 %1147
      %1149 = vrot.lane.b32.xlu0 %v1071, 82
      %v1150 = vpop.permute.xlu0 %1149
      %1151 = vrot.lane.b32.xlu0 %v1138, 82
      %v1152 = vpop.permute.xlu0 %1151
      %1153 = vrot.lane.b32.xlu0 %v1079, 82
      %v1154 = vpop.permute.xlu0 %1153
      %vm1155 = vcmask 670720
      %v1156 = vsel %vm1155, %v1140, %v1142
      %v1157 = vsel %vm1155, %v1142, %v1144
      %v1158 = vsel %vm1155, %v1144, %v1146
      %v1159 = vsel %vm1155, %v1146, %v1148
      %v1160 = vsel %vm1155, %v1148, %v1150
      %v1161 = vsel %vm1155, %v1150, %v1152
      %v1162 = vsel %vm1155, %v1152, %v1154
      %v1165 = vsel %vm528, %v957, %v982
      %v1168 = vsel %vm528, %v958, %v983
      %v1171 = vsel %vm528, %v959, %v984
      %v1174 = vsel %vm528, %v960, %v985
      %v1177 = vsel %vm528, %v961, %v986
      %v1180 = vsel %vm528, %v962, %v987
      %v1183 = vsel %vm528, %v963, %v988
      %v1185 = vsel %vm550, %v1165, %v1008
      %v1187 = vsel %vm550, %v1168, %v1009
      %v1189 = vsel %vm550, %v1171, %v1010
      %v1191 = vsel %vm550, %v1174, %v1011
      %v1193 = vsel %vm550, %v1177, %v1012
      %v1195 = vsel %vm550, %v1180, %v1013
      %v1197 = vsel %vm550, %v1183, %v1014
      %v1199 = vsel %vm565, %v1185, %v1032
      %v1202 = vsel %vm565, %v1187, %v1033
      %v1205 = vsel %vm565, %v1189, %v1034
      %v1208 = vsel %vm565, %v1191, %v1035
      %v1211 = vsel %vm565, %v1193, %v1036
      %v1214 = vsel %vm565, %v1195, %v1037
      %v1217 = vsel %vm565, %v1197, %v1038
      %v1220 = vsel %vm528, %v404, %v1056
      %v1222 = vsel %vm528, %v405, %v1057
      %v1224 = vsel %vm528, %v406, %v1058
      %v1226 = vsel %vm528, %v407, %v1059
      %v1228 = vsel %vm528, %v408, %v1060
      %v1230 = vsel %vm528, %v409, %v1061
      %v1232 = vsel %vm528, %v410, %v1062
      %v1234 = vsel %vm550, %v1220, %v1098
      %v1236 = vsel %vm550, %v1222, %v1099
      %v1238 = vsel %vm550, %v1224, %v1100
      %v1240 = vsel %vm550, %v1226, %v1101
      %v1242 = vsel %vm550, %v1228, %v1102
      %v1244 = vsel %vm550, %v1230, %v1103
      %v1246 = vsel %vm550, %v1232, %v1104
      %v1248 = vsel %vm565, %v1234, %v1131
      %v1251 = vsel %vm565, %v1236, %v1132
      %v1254 = vsel %vm565, %v1238, %v1133
      %v1257 = vsel %vm565, %v1240, %v1134
      %v1260 = vsel %vm565, %v1242, %v1135
      %v1263 = vsel %vm565, %v1244, %v1136
      %v1266 = vsel %vm565, %v1246, %v1137
      %s1268 = scalar_lea.vmem %s1, 4
      %v1269 = vld [vmem:[%s1268] sm:$0xf]
      %v1271 = vsel %vm644, %v1269, 0
      %v1274 = vsel %vm528, %v1156, 0
      %v1277 = vsel %vm528, %v1157, 0
      %v1280 = vsel %vm528, %v1158, 0
      %v1283 = vsel %vm528, %v1159, 0
      %v1286 = vsel %vm528, %v1160, 0
      %v1289 = vsel %vm528, %v1161, 0
      %v1292 = vsel %vm528, %v1162, 0
      %1294 = vmatprep.subr.bf16.mxu0 %v1202
      %1295 = vmatpush1.bf16.msra.mxu0 %v1199
      %1296 = vmatprep.subr.bf16.mxu0 %v1251
      %1297 = vmatpush1.bf16.msra.mxu0 %v1248
      %1298 = vmatprep.subr.bf16.mxu0 %v1277
      %1299 = vmatpush1.bf16.msra.mxu0 %v1274
      %1300 = vmatprep.subr.bf16.mxu0 0
      %1301 = vmatpush1.bf16.msra.mxu0 0
      %1302 = vmatprep.subr.bf16.mxu0 0
      %1303 = vmatpush1.bf16.msra.mxu0 0
      %1304 = vmatprep.subr.bf16.mxu0 0
      %1305 = vmatpush1.bf16.msra.mxu0 0
      %1306 = vmatprep.subr.bf16.mxu0 0
      %1307 = vmatpush1.bf16.msra.mxu0 0
      %1308 = vmatprep.subr.bf16.mxu0 0
      %1309 = vmatpush1.bf16.msra.mxu0 0
      %1310 = vmatprep.subr.bf16.mxu0 0
      %1311 = vmatpush1.bf16.msra.mxu0 0
      %1312 = vmatprep.subr.bf16.mxu0 0
      %1313 = vmatpush1.bf16.msra.mxu0 0
      %1314 = vmatprep.subr.bf16.mxu0 0
      %1315 = vmatpush1.bf16.msra.mxu0 0
      %1316 = vmatprep.subr.bf16.mxu0 0
      %1317 = vmatpush1.bf16.msra.mxu0 0
      %1318 = vmatprep.subr.bf16.mxu0 0
      %1319 = vmatpush1.bf16.msra.mxu0 0
      %1320 = vmatprep.subr.bf16.mxu0 0
      %1321 = vmatpush1.bf16.msra.mxu0 0
      %1322 = vmatprep.subr.bf16.mxu0 0
      %1323 = vmatpush1.bf16.msra.mxu0 0
      %1324 = vmatprep.subr.bf16.mxu0 0
      %1325 = vmatpush1.bf16.msra.mxu0 0
      %1326 = vmatprep.mubr.bf16.mxu0 0
      %1327 = vmatmul.mubr.bf16.gmra.mrb[0].mxu0 %v1271
      %v1328 = vpop.f32.mrb[0].mxu0
      %v1329 = vadd.f32 0.0, %v1328
      %v1330 = vpop.f32.mrb[0].mxu0
      %v1331 = vadd.f32 0.0, %v1330
      %v1332 = vpop.f32.mrb[0].mxu0
      %v1333 = vpop.f32.mrb[0].mxu0
      %1334 = vdwg.mxu0
      %1335 = vmatprep.subr.bf16.mxu0 %v1208
      %1336 = vmatpush1.bf16.msra.mxu0 %v1205
      %1337 = vmatprep.subr.bf16.mxu0 %v1257
      %1338 = vmatpush1.bf16.msra.mxu0 %v1254
      %1339 = vmatprep.subr.bf16.mxu0 %v1283
      %1340 = vmatpush1.bf16.msra.mxu0 %v1280
      %1341 = vmatprep.subr.bf16.mxu0 0
      %1342 = vmatpush1.bf16.msra.mxu0 0
      %1343 = vmatprep.subr.bf16.mxu0 0
      %1344 = vmatpush1.bf16.msra.mxu0 0
      %1345 = vmatprep.subr.bf16.mxu0 0
      %1346 = vmatpush1.bf16.msra.mxu0 0
      %1347 = vmatprep.subr.bf16.mxu0 0
      %1348 = vmatpush1.bf16.msra.mxu0 0
      %1349 = vmatprep.subr.bf16.mxu0 0
      %1350 = vmatpush1.bf16.msra.mxu0 0
      %1351 = vmatprep.subr.bf16.mxu0 0
      %1352 = vmatpush1.bf16.msra.mxu0 0
      %1353 = vmatprep.subr.bf16.mxu0 0
      %1354 = vmatpush1.bf16.msra.mxu0 0
      %1355 = vmatprep.subr.bf16.mxu0 0
      %1356 = vmatpush1.bf16.msra.mxu0 0
      %1357 = vmatprep.subr.bf16.mxu0 0
      %1358 = vmatpush1.bf16.msra.mxu0 0
      %1359 = vmatprep.subr.bf16.mxu0 0
      %1360 = vmatpush1.bf16.msra.mxu0 0
      %1361 = vmatprep.subr.bf16.mxu0 0
      %1362 = vmatpush1.bf16.msra.mxu0 0
      %1363 = vmatprep.subr.bf16.mxu0 0
      %1364 = vmatpush1.bf16.msra.mxu0 0
      %1365 = vmatprep.subr.bf16.mxu0 0
      %1366 = vmatpush1.bf16.msra.mxu0 0
      %1367 = vmatprep.mubr.bf16.mxu0 0
      %1368 = vmatmul.mubr.bf16.gmra.mrb[0].mxu0 %v1271
      %v1369 = vpop.f32.mrb[0].mxu0
      %v1370 = vadd.f32 0.0, %v1369
      %v1371 = vpop.f32.mrb[0].mxu0
      %v1372 = vadd.f32 0.0, %v1371
      %v1373 = vpop.f32.mrb[0].mxu0
      %v1374 = vpop.f32.mrb[0].mxu0
      %1375 = vdwg.mxu0
      %1376 = vmatprep.subr.bf16.mxu0 %v1214
      %1377 = vmatpush1.bf16.msra.mxu0 %v1211
      %1378 = vmatprep.subr.bf16.mxu0 %v1263
      %1379 = vmatpush1.bf16.msra.mxu0 %v1260
      %1380 = vmatprep.subr.bf16.mxu0 %v1289
      %1381 = vmatpush1.bf16.msra.mxu0 %v1286
      %1382 = vmatprep.subr.bf16.mxu0 0
      %1383 = vmatpush1.bf16.msra.mxu0 0
      %1384 = vmatprep.subr.bf16.mxu0 0
      %1385 = vmatpush1.bf16.msra.mxu0 0
      %1386 = vmatprep.subr.bf16.mxu0 0
      %1387 = vmatpush1.bf16.msra.mxu0 0
      %1388 = vmatprep.subr.bf16.mxu0 0
      %1389 = vmatpush1.bf16.msra.mxu0 0
      %1390 = vmatprep.subr.bf16.mxu0 0
      %1391 = vmatpush1.bf16.msra.mxu0 0
      %1392 = vmatprep.subr.bf16.mxu0 0
      %1393 = vmatpush1.bf16.msra.mxu0 0
      %1394 = vmatprep.subr.bf16.mxu0 0
      %1395 = vmatpush1.bf16.msra.mxu0 0
      %1396 = vmatprep.subr.bf16.mxu0 0
      %1397 = vmatpush1.bf16.msra.mxu0 0
      %1398 = vmatprep.subr.bf16.mxu0 0
      %1399 = vmatpush1.bf16.msra.mxu0 0
      %1400 = vmatprep.subr.bf16.mxu0 0
      %1401 = vmatpush1.bf16.msra.mxu0 0
      %1402 = vmatprep.subr.bf16.mxu0 0
      %1403 = vmatpush1.bf16.msra.mxu0 0
      %1404 = vmatprep.subr.bf16.mxu0 0
      %1405 = vmatpush1.bf16.msra.mxu0 0
      %1406 = vmatprep.subr.bf16.mxu0 0
      %1407 = vmatpush1.bf16.msra.mxu0 0
      %1408 = vmatprep.mubr.bf16.mxu0 0
      %1409 = vmatmul.mubr.bf16.gmra.mrb[0].mxu0 %v1271
      %v1410 = vpop.f32.mrb[0].mxu0
      %v1411 = vadd.f32 0.0, %v1410
      %v1412 = vpop.f32.mrb[0].mxu0
      %v1413 = vadd.f32 0.0, %v1412
      %v1414 = vpop.f32.mrb[0].mxu0
      %v1415 = vpop.f32.mrb[0].mxu0
      %1416 = vdwg.mxu0
      %1417 = vmatprep.subr.bf16.mxu0 0
      %1418 = vmatpush1.bf16.msra.mxu0 %v1217
      %1419 = vmatprep.subr.bf16.mxu0 0
      %1420 = vmatpush1.bf16.msra.mxu0 %v1266
      %1421 = vmatprep.subr.bf16.mxu0 0
      %1422 = vmatpush1.bf16.msra.mxu0 %v1292
      %1423 = vmatprep.subr.bf16.mxu0 0
      %1424 = vmatpush1.bf16.msra.mxu0 0
      %1425 = vmatprep.subr.bf16.mxu0 0
      %1426 = vmatpush1.bf16.msra.mxu0 0
      %1427 = vmatprep.subr.bf16.mxu0 0
      %1428 = vmatpush1.bf16.msra.mxu0 0
      %1429 = vmatprep.subr.bf16.mxu0 0
      %1430 = vmatpush1.bf16.msra.mxu0 0
      %1431 = vmatprep.subr.bf16.mxu0 0
      %1432 = vmatpush1.bf16.msra.mxu0 0
      %1433 = vmatprep.subr.bf16.mxu0 0
      %1434 = vmatpush1.bf16.msra.mxu0 0
      %1435 = vmatprep.subr.bf16.mxu0 0
      %1436 = vmatpush1.bf16.msra.mxu0 0
      %1437 = vmatprep.subr.bf16.mxu0 0
      %1438 = vmatpush1.bf16.msra.mxu0 0
      %1439 = vmatprep.subr.bf16.mxu0 0
      %1440 = vmatpush1.bf16.msra.mxu0 0
      %1441 = vmatprep.subr.bf16.mxu0 0
      %1442 = vmatpush1.bf16.msra.mxu0 0
      %1443 = vmatprep.subr.bf16.mxu0 0
      %1444 = vmatpush1.bf16.msra.mxu0 0
      %1445 = vmatprep.subr.bf16.mxu0 0
      %1446 = vmatpush1.bf16.msra.mxu0 0
      %1447 = vmatprep.subr.bf16.mxu0 0
      %1448 = vmatpush1.bf16.msra.mxu0 0
      %1449 = vmatprep.mubr.bf16.mxu0 0
      %1450 = vmatmul.mubr.bf16.gmra.mrb[0].mxu0 %v1271
      %v1451 = vpop.f32.mrb[0].mxu0
      %v1452 = vadd.f32 0.0, %v1451
      %v1453 = vpop.f32.mrb[0].mxu0
      %v1454 = vpop.f32.mrb[0].mxu0
      %v1455 = vpop.f32.mrb[0].mxu0
      %1456 = vdwg.mxu0
      %v1457 = vmin.f32 %v1329, 20.0
      %v1458 = vmin.f32 %v1331, 20.0
      %v1459 = vmin.f32 %v1370, 20.0
      %v1460 = vmin.f32 %v1372, 20.0
      %v1461 = vmin.f32 %v1411, 20.0
      %v1462 = vmin.f32 %v1413, 20.0
      %v1463 = vmin.f32 %v1452, 20.0
      %v1464 = vmul.f32 %v1457, 1.442695
      %v1465 = vpow.pop %v1464
      %v1466 = vmul.f32 %v1458, 1.442695
      %v1467 = vpow.pop %v1466
      %v1468 = vmul.f32 %v1459, 1.442695
      %v1469 = vpow.pop %v1468
      %v1470 = vmul.f32 %v1460, 1.442695
      %v1471 = vpow.pop %v1470
      %v1472 = vmul.f32 %v1461, 1.442695
      %v1473 = vpow.pop %v1472
      %v1474 = vmul.f32 %v1462, 1.442695
      %v1475 = vpow.pop %v1474
      %v1476 = vmul.f32 %v1463, 1.442695
      %v1477 = vpow.pop %v1476
      %v1478 = vadd.f32 %v1465, 1.0
      %v1479 = vadd.f32 %v1467, 1.0
      %v1480 = vadd.f32 %v1469, 1.0
      %v1481 = vadd.f32 %v1471, 1.0
      %v1482 = vadd.f32 %v1473, 1.0
      %v1483 = vadd.f32 %v1475, 1.0
      %v1484 = vadd.f32 %v1477, 1.0
      %v1485 = vmul.f32 %v1478, %v1478
      %v1486 = vmul.f32 %v1479, %v1479
      %v1487 = vmul.f32 %v1480, %v1480
      %v1488 = vmul.f32 %v1481, %v1481
      %v1489 = vmul.f32 %v1482, %v1482
      %v1490 = vmul.f32 %v1483, %v1483
      %v1491 = vmul.f32 %v1484, %v1484
      %v1492 = vsub.f32 %v1485, 1.0
      %v1493 = vsub.f32 %v1486, 1.0
      %v1494 = vsub.f32 %v1487, 1.0
      %v1495 = vsub.f32 %v1488, 1.0
      %v1496 = vsub.f32 %v1489, 1.0
      %v1497 = vsub.f32 %v1490, 1.0
      %v1498 = vsub.f32 %v1491, 1.0
      %v1499 = vmul.f32 %v1329, %v1492
      %v1500 = vmul.f32 %v1331, %v1493
      %v1501 = vmul.f32 %v1370, %v1494
      %v1502 = vmul.f32 %v1372, %v1495
      %v1503 = vmul.f32 %v1411, %v1496
      %v1504 = vmul.f32 %v1413, %v1497
      %v1505 = vmul.f32 %v1452, %v1498
      %v1506 = vadd.f32 %v1485, 1.0
      %v1507 = vadd.f32 %v1486, 1.0
      %v1508 = vadd.f32 %v1487, 1.0
      %v1509 = vadd.f32 %v1488, 1.0
      %v1510 = vadd.f32 %v1489, 1.0
      %v1511 = vadd.f32 %v1490, 1.0
      %v1512 = vadd.f32 %v1491, 1.0
      %v1513 = vrcp.pop %v1506
      %v1514 = vrcp.pop %v1507
      %v1515 = vrcp.pop %v1508
      %v1516 = vrcp.pop %v1509
      %v1517 = vrcp.pop %v1510
      %v1518 = vrcp.pop %v1511
      %v1519 = vrcp.pop %v1512
      %v1520 = vmul.f32 %v1499, %v1513
      %v1521 = vmul.f32 %v1500, %v1514
      %v1522 = vmul.f32 %v1501, %v1515
      %v1523 = vmul.f32 %v1502, %v1516
      %v1524 = vmul.f32 %v1503, %v1517
      %v1525 = vmul.f32 %v1504, %v1518
      %v1526 = vmul.f32 %v1505, %v1519
      %vm1527 = vcmp.gt.f32.partialorder %v1329, 20.0
      %vm1528 = vcmp.gt.f32.partialorder %v1331, 20.0
      %vm1529 = vcmp.gt.f32.partialorder %v1370, 20.0
      %vm1530 = vcmp.gt.f32.partialorder %v1372, 20.0
      %vm1531 = vcmp.gt.f32.partialorder %v1411, 20.0
      %vm1532 = vcmp.gt.f32.partialorder %v1413, 20.0
      %vm1533 = vcmp.gt.f32.partialorder %v1452, 20.0
      %v1534 = vsel %vm1527, %v1329, %v1520
      %v1535 = vsel %vm1528, %v1331, %v1521
      %v1536 = vsel %vm1529, %v1370, %v1522
      %v1537 = vsel %vm1530, %v1372, %v1523
      %v1538 = vsel %vm1531, %v1411, %v1524
      %v1539 = vsel %vm1532, %v1413, %v1525
      %v1540 = vsel %vm1533, %v1452, %v1526
      %v1541 = vpack.c.bf16 %v1534, %v1534
      %v1542 = vpack.c.bf16 %v1535, %v1535
      %v1543 = vpack.c.bf16 %v1536, %v1536
      %v1544 = vpack.c.bf16 %v1537, %v1537
      %v1545 = vpack.c.bf16 %v1538, %v1538
      %v1546 = vpack.c.bf16 %v1539, %v1539
      %v1547 = vpack.c.bf16 %v1540, %v1540
      %v1548 = vcombine.low %v199, %v199
      %v1550 = vunpack.c.l.s4 1983009808
      %v1551 = vunpack.c.0.s8 %v1550
      %v1552 = vlaneseq
      %v1553 = vshrl.u32 %v1552, 7
      %v1554 = vsub.s32 %v1551, %v1553
      %v1555 = vrot.slane %v1548, %v1554
      %v1556 = vcombine.high %v1555, %v1555
      %1557 = vrot.lane.b32.xlu0 %v1555, 110
      %v1558 = vpop.permute.xlu0 %1557
      %1559 = vrot.lane.b32.xlu0 %v1556, 110
      %v1560 = vpop.permute.xlu0 %1559
      %1561 = vrot.lane.b32.xlu0 %v931, 110
      %v1562 = vpop.permute.xlu0 %1561
      %1563 = vrot.lane.b32.xlu0 %v964, 110
      %v1564 = vpop.permute.xlu0 %1563
      %1565 = vrot.lane.b32.xlu0 %v280, 110
      %v1566 = vpop.permute.xlu0 %1565
      %1567 = vrot.lane.b32.xlu0 %v281, 110
      %v1568 = vpop.permute.xlu0 %1567
      %1569 = vrot.lane.b32.xlu0 %v215, 110
      %v1570 = vpop.permute.xlu0 %1569
      %1571 = vrot.lane.b32.xlu0 %v223, 110
      %v1572 = vpop.permute.xlu0 %1571
      %vm1573 = vcmask 900096
      %v1574 = vsel %vm1573, %v1558, %v1560
      %v1575 = vsel %vm1573, %v1560, %v1562
      %v1576 = vsel %vm1573, %v1562, %v1564
      %v1577 = vsel %vm1573, %v1564, %v1566
      %v1578 = vsel %vm1573, %v1566, %v1568
      %v1579 = vsel %vm1573, %v1568, %v1570
      %v1580 = vsel %vm1573, %v1570, %v1572
      %v1581 = vcombine.low %v931, %v931
      %1582 = vrot.lane.b32.xlu0 %v1581, 92
      %v1583 = vpop.permute.xlu0 %1582
      %1584 = vrot.lane.b32.xlu0 %v931, 92
      %v1585 = vpop.permute.xlu0 %1584
      %1586 = vrot.lane.b32.xlu0 %v989, 92
      %v1587 = vpop.permute.xlu0 %1586
      %1588 = vrot.lane.b32.xlu0 %v938, 92
      %v1589 = vpop.permute.xlu0 %1588
      %1590 = vrot.lane.b32.xlu0 %v990, 92
      %v1591 = vpop.permute.xlu0 %1590
      %1592 = vrot.lane.b32.xlu0 %v215, 92
      %v1593 = vpop.permute.xlu0 %1592
      %1594 = vrot.lane.b32.xlu0 %v323, 92
      %v1595 = vpop.permute.xlu0 %1594
      %1596 = vrot.lane.b32.xlu0 %v222, 92
      %v1597 = vpop.permute.xlu0 %1596
      %vm1598 = vcmask 752640
      %v1599 = vsel %vm1598, %v1583, %v1585
      %v1600 = vsel %vm1598, %v1585, %v1587
      %v1601 = vsel %vm1598, %v1587, %v1589
      %v1602 = vsel %vm1598, %v1589, %v1591
      %v1603 = vsel %vm1598, %v1591, %v1593
      %v1604 = vsel %vm1598, %v1593, %v1595
      %v1605 = vsel %vm1598, %v1595, %v1597
      %1606 = vrot.lane.b32.xlu0 %v215, 16
      %v1607 = vpop.permute.xlu0 %1606
      %1608 = vrot.lane.b32.xlu0 %v351, 16
      %v1609 = vpop.permute.xlu0 %1608
      %1610 = vrot.lane.b32.xlu0 %v289, 16
      %v1611 = vpop.permute.xlu0 %1610
      %1612 = vrot.lane.b32.xlu0 %v324, 16
      %v1613 = vpop.permute.xlu0 %1612
      %1614 = vrot.lane.b32.xlu0 %v232, 16
      %v1615 = vpop.permute.xlu0 %1614
      %1616 = vrot.lane.b32.xlu0 %v352, 16
      %v1617 = vpop.permute.xlu0 %1616
      %1618 = vrot.lane.b32.xlu0 %v298, 16
      %v1619 = vpop.permute.xlu0 %1618
      %1620 = vrot.lane.b32.xlu0 %v326, 16
      %v1621 = vpop.permute.xlu0 %1620
      %vm1622 = vcmask 130048
      %v1623 = vsel %vm1622, %v1607, %v1609
      %v1624 = vsel %vm1622, %v1609, %v1611
      %v1625 = vsel %vm1622, %v1611, %v1613
      %v1626 = vsel %vm1622, %v1613, %v1615
      %v1627 = vsel %vm1622, %v1615, %v1617
      %v1628 = vsel %vm1622, %v1617, %v1619
      %v1629 = vsel %vm1622, %v1619, %v1621
      %1630 = vrot.lane.b32.xlu0 %v289, 108
      %v1631 = vpop.permute.xlu0 %1630
      %1632 = vrot.lane.b32.xlu0 %v290, 108
      %v1633 = vpop.permute.xlu0 %1632
      %1634 = vrot.lane.b32.xlu0 %v232, 108
      %v1635 = vpop.permute.xlu0 %1634
      %1636 = vrot.lane.b32.xlu0 %v240, 108
      %v1637 = vpop.permute.xlu0 %1636
      %1638 = vrot.lane.b32.xlu0 %v298, 108
      %v1639 = vpop.permute.xlu0 %1638
      %1640 = vrot.lane.b32.xlu0 %v411, 108
      %v1641 = vpop.permute.xlu0 %1640
      %1642 = vrot.lane.b32.xlu0 %v248, 108
      %v1643 = vpop.permute.xlu0 %1642
      %1644 = vrot.lane.b32.xlu0 %v385, 108
      %v1645 = vpop.permute.xlu0 %1644
      %vm1646 = vcmask 883712
      %v1647 = vsel %vm1646, %v1631, %v1633
      %v1648 = vsel %vm1646, %v1633, %v1635
      %v1649 = vsel %vm1646, %v1635, %v1637
      %v1650 = vsel %vm1646, %v1637, %v1639
      %v1651 = vsel %vm1646, %v1639, %v1641
      %v1652 = vsel %vm1646, %v1641, %v1643
      %v1653 = vsel %vm1646, %v1643, %v1645
      %v1654 = vcombine.high %v204, %v204
      %v1656 = vunpack.c.l.s4 1983009808
      %v1657 = vunpack.c.0.s8 %v1656
      %v1658 = vlaneseq
      %v1659 = vshrl.u32 %v1658, 7
      %v1660 = vsub.s32 %v1657, %v1659
      %v1661 = vrot.slane %v1654, %v1660
      %v1662 = vcombine.low %v1661, %v1661
      %1663 = vrot.lane.b32.xlu0 %v384, 32
      %v1664 = vpop.permute.xlu0 %1663
      %1665 = vrot.lane.b32.xlu0 %v445, 32
      %v1666 = vpop.permute.xlu0 %1665
      %1667 = vrot.lane.b32.xlu0 %v444, 32
      %v1668 = vpop.permute.xlu0 %1667
      %1669 = vrot.lane.b32.xlu0 %v1072, 32
      %v1670 = vpop.permute.xlu0 %1669
      %1671 = vrot.lane.b32.xlu0 %v1071, 32
      %v1672 = vpop.permute.xlu0 %1671
      %1673 = vrot.lane.b32.xlu0 %v1080, 32
      %v1674 = vpop.permute.xlu0 %1673
      %1675 = vrot.lane.b32.xlu0 %v1079, 32
      %v1676 = vpop.permute.xlu0 %1675
      %1677 = vrot.lane.b32.xlu0 %v1662, 32
      %v1678 = vpop.permute.xlu0 %1677
      %vm1679 = vcmask 261120
      %v1680 = vsel %vm1679, %v1664, %v1666
      %v1681 = vsel %vm1679, %v1666, %v1668
      %v1682 = vsel %vm1679, %v1668, %v1670
      %v1683 = vsel %vm1679, %v1670, %v1672
      %v1684 = vsel %vm1679, %v1672, %v1674
      %v1685 = vsel %vm1679, %v1674, %v1676
      %v1686 = vsel %vm1679, %v1676, %v1678
      %1687 = vrot.lane.b32.xlu0 %v248, 14
      %v1688 = vpop.permute.xlu0 %1687
      %1689 = vrot.lane.b32.xlu0 %v478, 14
      %v1690 = vpop.permute.xlu0 %1689
      %1691 = vrot.lane.b32.xlu0 %v477, 14
      %v1692 = vpop.permute.xlu0 %1691
      %1693 = vrot.lane.b32.xlu0 %v445, 14
      %v1694 = vpop.permute.xlu0 %1693
      %1695 = vrot.lane.b32.xlu0 %v444, 14
      %v1696 = vpop.permute.xlu0 %1695
      %1697 = vrot.lane.b32.xlu0 %v1113, 14
      %v1698 = vpop.permute.xlu0 %1697
      %1699 = vrot.lane.b32.xlu0 %v1112, 14
      %v1700 = vpop.permute.xlu0 %1699
      %1701 = vrot.lane.b32.xlu0 %v1080, 14
      %v1702 = vpop.permute.xlu0 %1701
      %vm1703 = vcmask 113664
      %v1704 = vsel %vm1703, %v1688, %v1690
      %v1705 = vsel %vm1703, %v1690, %v1692
      %v1706 = vsel %vm1703, %v1692, %v1694
      %v1707 = vsel %vm1703, %v1694, %v1696
      %v1708 = vsel %vm1703, %v1696, %v1698
      %v1709 = vsel %vm1703, %v1698, %v1700
      %v1710 = vsel %vm1703, %v1700, %v1702
      %v1711 = vcombine.high %v1079, %v1079
      %v1712 = vcombine.high %v1661, %v1661
      %1713 = vrot.lane.b32.xlu0 %v444, 124
      %v1714 = vpop.permute.xlu0 %1713
      %1715 = vrot.lane.b32.xlu0 %v503, 124
      %v1716 = vpop.permute.xlu0 %1715
      %1717 = vrot.lane.b32.xlu0 %v1071, 124
      %v1718 = vpop.permute.xlu0 %1717
      %1719 = vrot.lane.b32.xlu0 %v1138, 124
      %v1720 = vpop.permute.xlu0 %1719
      %1721 = vrot.lane.b32.xlu0 %v1079, 124
      %v1722 = vpop.permute.xlu0 %1721
      %1723 = vrot.lane.b32.xlu0 %v1711, 124
      %v1724 = vpop.permute.xlu0 %1723
      %1725 = vrot.lane.b32.xlu0 %v1661, 124
      %v1726 = vpop.permute.xlu0 %1725
      %1727 = vrot.lane.b32.xlu0 %v1712, 124
      %v1728 = vpop.permute.xlu0 %1727
      %vm1729 = vcmask 1014784
      %v1730 = vsel %vm1729, %v1714, %v1716
      %v1731 = vsel %vm1729, %v1716, %v1718
      %v1732 = vsel %vm1729, %v1718, %v1720
      %v1733 = vsel %vm1729, %v1720, %v1722
      %v1734 = vsel %vm1729, %v1722, %v1724
      %v1735 = vsel %vm1729, %v1724, %v1726
      %v1736 = vsel %vm1729, %v1726, %v1728
      %v1739 = vsel %vm528, %v931, %v1574
      %v1742 = vsel %vm528, %v964, %v1575
      %v1745 = vsel %vm528, %v938, %v1576
      %v1748 = vsel %vm528, %v939, %v1577
      %v1751 = vsel %vm528, %v215, %v1578
      %v1754 = vsel %vm528, %v223, %v1579
      %v1757 = vsel %vm528, %v222, %v1580
      %v1759 = vsel %vm550, %v1739, %v1599
      %v1761 = vsel %vm550, %v1742, %v1600
      %v1763 = vsel %vm550, %v1745, %v1601
      %v1765 = vsel %vm550, %v1748, %v1602
      %v1767 = vsel %vm550, %v1751, %v1603
      %v1769 = vsel %vm550, %v1754, %v1604
      %v1771 = vsel %vm550, %v1757, %v1605
      %v1773 = vsel %vm565, %v1759, %v1623
      %v1776 = vsel %vm565, %v1761, %v1624
      %v1779 = vsel %vm565, %v1763, %v1625
      %v1782 = vsel %vm565, %v1765, %v1626
      %v1785 = vsel %vm565, %v1767, %v1627
      %v1788 = vsel %vm565, %v1769, %v1628
      %v1791 = vsel %vm565, %v1771, %v1629
      %v1794 = vsel %vm528, %v404, %v1647
      %v1796 = vsel %vm528, %v405, %v1648
      %v1798 = vsel %vm528, %v406, %v1649
      %v1800 = vsel %vm528, %v407, %v1650
      %v1802 = vsel %vm528, %v408, %v1651
      %v1804 = vsel %vm528, %v409, %v1652
      %v1806 = vsel %vm528, %v410, %v1653
      %v1808 = vsel %vm550, %v1794, %v1680
      %v1810 = vsel %vm550, %v1796, %v1681
      %v1812 = vsel %vm550, %v1798, %v1682
      %v1814 = vsel %vm550, %v1800, %v1683
      %v1816 = vsel %vm550, %v1802, %v1684
      %v1818 = vsel %vm550, %v1804, %v1685
      %v1820 = vsel %vm550, %v1806, %v1686
      %v1822 = vsel %vm565, %v1808, %v1704
      %v1825 = vsel %vm565, %v1810, %v1705
      %v1828 = vsel %vm565, %v1812, %v1706
      %v1831 = vsel %vm565, %v1814, %v1707
      %v1834 = vsel %vm565, %v1816, %v1708
      %v1837 = vsel %vm565, %v1818, %v1709
      %v1840 = vsel %vm565, %v1820, %v1710
      %s1842 = scalar_lea.vmem %s1, 8
      %v1843 = vld [vmem:[%s1842] sm:$0xf]
      %v1845 = vsel %vm644, %v1843, 0
      %v1848 = vsel %vm528, %v1730, 0
      %v1851 = vsel %vm528, %v1731, 0
      %v1854 = vsel %vm528, %v1732, 0
      %v1857 = vsel %vm528, %v1733, 0
      %v1860 = vsel %vm528, %v1734, 0
      %v1863 = vsel %vm528, %v1735, 0
      %v1866 = vsel %vm528, %v1736, 0
      %1868 = vmatprep.subr.bf16.mxu0 %v1776
      %1869 = vmatpush1.bf16.msra.mxu0 %v1773
      %1870 = vmatprep.subr.bf16.mxu0 %v1825
      %1871 = vmatpush1.bf16.msra.mxu0 %v1822
      %1872 = vmatprep.subr.bf16.mxu0 %v1851
      %1873 = vmatpush1.bf16.msra.mxu0 %v1848
      %1874 = vmatprep.subr.bf16.mxu0 0
      %1875 = vmatpush1.bf16.msra.mxu0 0
      %1876 = vmatprep.subr.bf16.mxu0 0
      %1877 = vmatpush1.bf16.msra.mxu0 0
      %1878 = vmatprep.subr.bf16.mxu0 0
      %1879 = vmatpush1.bf16.msra.mxu0 0
      %1880 = vmatprep.subr.bf16.mxu0 0
      %1881 = vmatpush1.bf16.msra.mxu0 0
      %1882 = vmatprep.subr.bf16.mxu0 0
      %1883 = vmatpush1.bf16.msra.mxu0 0
      %1884 = vmatprep.subr.bf16.mxu0 0
      %1885 = vmatpush1.bf16.msra.mxu0 0
      %1886 = vmatprep.subr.bf16.mxu0 0
      %1887 = vmatpush1.bf16.msra.mxu0 0
      %1888 = vmatprep.subr.bf16.mxu0 0
      %1889 = vmatpush1.bf16.msra.mxu0 0
      %1890 = vmatprep.subr.bf16.mxu0 0
      %1891 = vmatpush1.bf16.msra.mxu0 0
      %1892 = vmatprep.subr.bf16.mxu0 0
      %1893 = vmatpush1.bf16.msra.mxu0 0
      %1894 = vmatprep.subr.bf16.mxu0 0
      %1895 = vmatpush1.bf16.msra.mxu0 0
      %1896 = vmatprep.subr.bf16.mxu0 0
      %1897 = vmatpush1.bf16.msra.mxu0 0
      %1898 = vmatprep.subr.bf16.mxu0 0
      %1899 = vmatpush1.bf16.msra.mxu0 0
      %1900 = vmatprep.mubr.bf16.mxu0 0
      %1901 = vmatmul.mubr.bf16.gmra.mrb[0].mxu0 %v1845
      %v1902 = vpop.f32.mrb[0].mxu0
      %v1903 = vadd.f32 0.0, %v1902
      %v1904 = vpop.f32.mrb[0].mxu0
      %v1905 = vadd.f32 0.0, %v1904
      %v1906 = vpop.f32.mrb[0].mxu0
      %v1907 = vpop.f32.mrb[0].mxu0
      %1908 = vdwg.mxu0
      %1909 = vmatprep.subr.bf16.mxu0 %v1782
      %1910 = vmatpush1.bf16.msra.mxu0 %v1779
      %1911 = vmatprep.subr.bf16.mxu0 %v1831
      %1912 = vmatpush1.bf16.msra.mxu0 %v1828
      %1913 = vmatprep.subr.bf16.mxu0 %v1857
      %1914 = vmatpush1.bf16.msra.mxu0 %v1854
      %1915 = vmatprep.subr.bf16.mxu0 0
      %1916 = vmatpush1.bf16.msra.mxu0 0
      %1917 = vmatprep.subr.bf16.mxu0 0
      %1918 = vmatpush1.bf16.msra.mxu0 0
      %1919 = vmatprep.subr.bf16.mxu0 0
      %1920 = vmatpush1.bf16.msra.mxu0 0
      %1921 = vmatprep.subr.bf16.mxu0 0
      %1922 = vmatpush1.bf16.msra.mxu0 0
      %1923 = vmatprep.subr.bf16.mxu0 0
      %1924 = vmatpush1.bf16.msra.mxu0 0
      %1925 = vmatprep.subr.bf16.mxu0 0
      %1926 = vmatpush1.bf16.msra.mxu0 0
      %1927 = vmatprep.subr.bf16.mxu0 0
      %1928 = vmatpush1.bf16.msra.mxu0 0
      %1929 = vmatprep.subr.bf16.mxu0 0
      %1930 = vmatpush1.bf16.msra.mxu0 0
      %1931 = vmatprep.subr.bf16.mxu0 0
      %1932 = vmatpush1.bf16.msra.mxu0 0
      %1933 = vmatprep.subr.bf16.mxu0 0
      %1934 = vmatpush1.bf16.msra.mxu0 0
      %1935 = vmatprep.subr.bf16.mxu0 0
      %1936 = vmatpush1.bf16.msra.mxu0 0
      %1937 = vmatprep.subr.bf16.mxu0 0
      %1938 = vmatpush1.bf16.msra.mxu0 0
      %1939 = vmatprep.subr.bf16.mxu0 0
      %1940 = vmatpush1.bf16.msra.mxu0 0
      %1941 = vmatprep.mubr.bf16.mxu0 0
      %1942 = vmatmul.mubr.bf16.gmra.mrb[0].mxu0 %v1845
      %v1943 = vpop.f32.mrb[0].mxu0
      %v1944 = vadd.f32 0.0, %v1943
      %v1945 = vpop.f32.mrb[0].mxu0
      %v1946 = vadd.f32 0.0, %v1945
      %v1947 = vpop.f32.mrb[0].mxu0
      %v1948 = vpop.f32.mrb[0].mxu0
      %1949 = vdwg.mxu0
      %1950 = vmatprep.subr.bf16.mxu0 %v1788
      %1951 = vmatpush1.bf16.msra.mxu0 %v1785
      %1952 = vmatprep.subr.bf16.mxu0 %v1837
      %1953 = vmatpush1.bf16.msra.mxu0 %v1834
      %1954 = vmatprep.subr.bf16.mxu0 %v1863
      %1955 = vmatpush1.bf16.msra.mxu0 %v1860
      %1956 = vmatprep.subr.bf16.mxu0 0
      %1957 = vmatpush1.bf16.msra.mxu0 0
      %1958 = vmatprep.subr.bf16.mxu0 0
      %1959 = vmatpush1.bf16.msra.mxu0 0
      %1960 = vmatprep.subr.bf16.mxu0 0
      %1961 = vmatpush1.bf16.msra.mxu0 0
      %1962 = vmatprep.subr.bf16.mxu0 0
      %1963 = vmatpush1.bf16.msra.mxu0 0
      %1964 = vmatprep.subr.bf16.mxu0 0
      %1965 = vmatpush1.bf16.msra.mxu0 0
      %1966 = vmatprep.subr.bf16.mxu0 0
      %1967 = vmatpush1.bf16.msra.mxu0 0
      %1968 = vmatprep.subr.bf16.mxu0 0
      %1969 = vmatpush1.bf16.msra.mxu0 0
      %1970 = vmatprep.subr.bf16.mxu0 0
      %1971 = vmatpush1.bf16.msra.mxu0 0
      %1972 = vmatprep.subr.bf16.mxu0 0
      %1973 = vmatpush1.bf16.msra.mxu0 0
      %1974 = vmatprep.subr.bf16.mxu0 0
      %1975 = vmatpush1.bf16.msra.mxu0 0
      %1976 = vmatprep.subr.bf16.mxu0 0
      %1977 = vmatpush1.bf16.msra.mxu0 0
      %1978 = vmatprep.subr.bf16.mxu0 0
      %1979 = vmatpush1.bf16.msra.mxu0 0
      %1980 = vmatprep.subr.bf16.mxu0 0
      %1981 = vmatpush1.bf16.msra.mxu0 0
      %1982 = vmatprep.mubr.bf16.mxu0 0
      %1983 = vmatmul.mubr.bf16.gmra.mrb[0].mxu0 %v1845
      %v1984 = vpop.f32.mrb[0].mxu0
      %v1985 = vadd.f32 0.0, %v1984
      %v1986 = vpop.f32.mrb[0].mxu0
      %v1987 = vadd.f32 0.0, %v1986
      %v1988 = vpop.f32.mrb[0].mxu0
      %v1989 = vpop.f32.mrb[0].mxu0
      %1990 = vdwg.mxu0
      %1991 = vmatprep.subr.bf16.mxu0 0
      %1992 = vmatpush1.bf16.msra.mxu0 %v1791
      %1993 = vmatprep.subr.bf16.mxu0 0
      %1994 = vmatpush1.bf16.msra.mxu0 %v1840
      %1995 = vmatprep.subr.bf16.mxu0 0
      %1996 = vmatpush1.bf16.msra.mxu0 %v1866
      %1997 = vmatprep.subr.bf16.mxu0 0
      %1998 = vmatpush1.bf16.msra.mxu0 0
      %1999 = vmatprep.subr.bf16.mxu0 0
      %2000 = vmatpush1.bf16.msra.mxu0 0
      %2001 = vmatprep.subr.bf16.mxu0 0
      %2002 = vmatpush1.bf16.msra.mxu0 0
      %2003 = vmatprep.subr.bf16.mxu0 0
      %2004 = vmatpush1.bf16.msra.mxu0 0
      %2005 = vmatprep.subr.bf16.mxu0 0
      %2006 = vmatpush1.bf16.msra.mxu0 0
      %2007 = vmatprep.subr.bf16.mxu0 0
      %2008 = vmatpush1.bf16.msra.mxu0 0
      %2009 = vmatprep.subr.bf16.mxu0 0
      %2010 = vmatpush1.bf16.msra.mxu0 0
      %2011 = vmatprep.subr.bf16.mxu0 0
      %2012 = vmatpush1.bf16.msra.mxu0 0
      %2013 = vmatprep.subr.bf16.mxu0 0
      %2014 = vmatpush1.bf16.msra.mxu0 0
      %2015 = vmatprep.subr.bf16.mxu0 0
      %2016 = vmatpush1.bf16.msra.mxu0 0
      %2017 = vmatprep.subr.bf16.mxu0 0
      %2018 = vmatpush1.bf16.msra.mxu0 0
      %2019 = vmatprep.subr.bf16.mxu0 0
      %2020 = vmatpush1.bf16.msra.mxu0 0
      %2021 = vmatprep.subr.bf16.mxu0 0
      %2022 = vmatpush1.bf16.msra.mxu0 0
      %2023 = vmatprep.mubr.bf16.mxu0 0
      %2024 = vmatmul.mubr.bf16.gmra.mrb[0].mxu0 %v1845
      %v2025 = vpop.f32.mrb[0].mxu0
      %v2026 = vadd.f32 0.0, %v2025
      %v2027 = vpop.f32.mrb[0].mxu0
      %v2028 = vpop.f32.mrb[0].mxu0
      %v2029 = vpop.f32.mrb[0].mxu0
      %2030 = vdwg.mxu0
      %v2031 = vmin.f32 %v1903, 20.0
      %v2032 = vmin.f32 %v1905, 20.0
      %v2033 = vmin.f32 %v1944, 20.0
      %v2034 = vmin.f32 %v1946, 20.0
      %v2035 = vmin.f32 %v1985, 20.0
      %v2036 = vmin.f32 %v1987, 20.0
      %v2037 = vmin.f32 %v2026, 20.0
      %v2038 = vmul.f32 %v2031, 1.442695
      %v2039 = vpow.pop %v2038
      %v2040 = vmul.f32 %v2032, 1.442695
      %v2041 = vpow.pop %v2040
      %v2042 = vmul.f32 %v2033, 1.442695
      %v2043 = vpow.pop %v2042
      %v2044 = vmul.f32 %v2034, 1.442695
      %v2045 = vpow.pop %v2044
      %v2046 = vmul.f32 %v2035, 1.442695
      %v2047 = vpow.pop %v2046
      %v2048 = vmul.f32 %v2036, 1.442695
      %v2049 = vpow.pop %v2048
      %v2050 = vmul.f32 %v2037, 1.442695
      %v2051 = vpow.pop %v2050
      %v2052 = vadd.f32 %v2039, 1.0
      %v2053 = vadd.f32 %v2041, 1.0
      %v2054 = vadd.f32 %v2043, 1.0
      %v2055 = vadd.f32 %v2045, 1.0
      %v2056 = vadd.f32 %v2047, 1.0
      %v2057 = vadd.f32 %v2049, 1.0
      %v2058 = vadd.f32 %v2051, 1.0
      %v2059 = vmul.f32 %v2052, %v2052
      %v2060 = vmul.f32 %v2053, %v2053
      %v2061 = vmul.f32 %v2054, %v2054
      %v2062 = vmul.f32 %v2055, %v2055
      %v2063 = vmul.f32 %v2056, %v2056
      %v2064 = vmul.f32 %v2057, %v2057
      %v2065 = vmul.f32 %v2058, %v2058
      %v2066 = vsub.f32 %v2059, 1.0
      %v2067 = vsub.f32 %v2060, 1.0
      %v2068 = vsub.f32 %v2061, 1.0
      %v2069 = vsub.f32 %v2062, 1.0
      %v2070 = vsub.f32 %v2063, 1.0
      %v2071 = vsub.f32 %v2064, 1.0
      %v2072 = vsub.f32 %v2065, 1.0
      %v2073 = vmul.f32 %v1903, %v2066
      %v2074 = vmul.f32 %v1905, %v2067
      %v2075 = vmul.f32 %v1944, %v2068
      %v2076 = vmul.f32 %v1946, %v2069
      %v2077 = vmul.f32 %v1985, %v2070
      %v2078 = vmul.f32 %v1987, %v2071
      %v2079 = vmul.f32 %v2026, %v2072
      %v2080 = vadd.f32 %v2059, 1.0
      %v2081 = vadd.f32 %v2060, 1.0
      %v2082 = vadd.f32 %v2061, 1.0
      %v2083 = vadd.f32 %v2062, 1.0
      %v2084 = vadd.f32 %v2063, 1.0
      %v2085 = vadd.f32 %v2064, 1.0
      %v2086 = vadd.f32 %v2065, 1.0
      %v2087 = vrcp.pop %v2080
      %v2088 = vrcp.pop %v2081
      %v2089 = vrcp.pop %v2082
      %v2090 = vrcp.pop %v2083
      %v2091 = vrcp.pop %v2084
      %v2092 = vrcp.pop %v2085
      %v2093 = vrcp.pop %v2086
      %v2094 = vmul.f32 %v2073, %v2087
      %v2095 = vmul.f32 %v2074, %v2088
      %v2096 = vmul.f32 %v2075, %v2089
      %v2097 = vmul.f32 %v2076, %v2090
      %v2098 = vmul.f32 %v2077, %v2091
      %v2099 = vmul.f32 %v2078, %v2092
      %v2100 = vmul.f32 %v2079, %v2093
      %vm2101 = vcmp.gt.f32.partialorder %v1903, 20.0
      %vm2102 = vcmp.gt.f32.partialorder %v1905, 20.0
      %vm2103 = vcmp.gt.f32.partialorder %v1944, 20.0
      %vm2104 = vcmp.gt.f32.partialorder %v1946, 20.0
      %vm2105 = vcmp.gt.f32.partialorder %v1985, 20.0
      %vm2106 = vcmp.gt.f32.partialorder %v1987, 20.0
      %vm2107 = vcmp.gt.f32.partialorder %v2026, 20.0
      %v2108 = vsel %vm2101, %v1903, %v2094
      %v2109 = vsel %vm2102, %v1905, %v2095
      %v2110 = vsel %vm2103, %v1944, %v2096
      %v2111 = vsel %vm2104, %v1946, %v2097
      %v2112 = vsel %vm2105, %v1985, %v2098
      %v2113 = vsel %vm2106, %v1987, %v2099
      %v2114 = vsel %vm2107, %v2026, %v2100
      %v2115 = vpack.c.bf16 %v2108, %v2108
      %v2116 = vpack.c.bf16 %v2109, %v2109
      %v2117 = vpack.c.bf16 %v2110, %v2110
      %v2118 = vpack.c.bf16 %v2111, %v2111
      %v2119 = vpack.c.bf16 %v2112, %v2112
      %v2120 = vpack.c.bf16 %v2113, %v2113
      %v2121 = vpack.c.bf16 %v2114, %v2114
      %v2129 = vrot.slane %v1541, 4
      %v2130 = vrot.slane %v1542, 4
      %v2131 = vrot.slane %v1543, 4
      %v2132 = vrot.slane %v1544, 4
      %v2133 = vrot.slane %v1545, 4
      %v2134 = vrot.slane %v1546, 4
      %v2135 = vrot.slane %v1547, 4
      %v2138 = vsel %vm550, %v916, %v2129
      %v2142 = vsel %vm550, %v917, %v2130
      %v2146 = vsel %vm550, %v918, %v2131
      %v2150 = vsel %vm550, %v919, %v2132
      %v2154 = vsel %vm550, %v920, %v2133
      %v2158 = vsel %vm550, %v921, %v2134
      %v2162 = vsel %vm550, %v922, %v2135
      %v2164 = vld [vmem:[%s2] sm:$0xf]
      %v2165 = vld [vmem:[%s3] sm:$0xff]
      %2167 = vset.pattern.permute.xlu0 0
      %2168 = vperm.xlu0 %2167, %v2165
      %v2169 = vpop.permute.xlu0 %2168
      %vm2171 = vcmask 195584
      %v2173 = vsel %vm2171, %v2164, 0
      %v2176 = vsel %vm550, %v2115, 0
      %v2179 = vsel %vm550, %v2116, 0
      %v2182 = vsel %vm550, %v2117, 0
      %v2185 = vsel %vm550, %v2118, 0
      %v2188 = vsel %vm550, %v2119, 0
      %v2191 = vsel %vm550, %v2120, 0
      %v2194 = vsel %vm550, %v2121, 0
      %2196 = vmatprep.subr.bf16.mxu0 %v2142
      %2197 = vmatpush1.bf16.msra.mxu0 %v2138
      %2198 = vmatprep.subr.bf16.mxu0 %v2179
      %2199 = vmatpush1.bf16.msra.mxu0 %v2176
      %2200 = vmatprep.subr.bf16.mxu0 0
      %2201 = vmatpush1.bf16.msra.mxu0 0
      %2202 = vmatprep.subr.bf16.mxu0 0
      %2203 = vmatpush1.bf16.msra.mxu0 0
      %2204 = vmatprep.subr.bf16.mxu0 0
      %2205 = vmatpush1.bf16.msra.mxu0 0
      %2206 = vmatprep.subr.bf16.mxu0 0
      %2207 = vmatpush1.bf16.msra.mxu0 0
      %2208 = vmatprep.subr.bf16.mxu0 0
      %2209 = vmatpush1.bf16.msra.mxu0 0
      %2210 = vmatprep.subr.bf16.mxu0 0
      %2211 = vmatpush1.bf16.msra.mxu0 0
      %2212 = vmatprep.subr.bf16.mxu0 0
      %2213 = vmatpush1.bf16.msra.mxu0 0
      %2214 = vmatprep.subr.bf16.mxu0 0
      %2215 = vmatpush1.bf16.msra.mxu0 0
      %2216 = vmatprep.subr.bf16.mxu0 0
      %2217 = vmatpush1.bf16.msra.mxu0 0
      %2218 = vmatprep.subr.bf16.mxu0 0
      %2219 = vmatpush1.bf16.msra.mxu0 0
      %2220 = vmatprep.subr.bf16.mxu0 0
      %2221 = vmatpush1.bf16.msra.mxu0 0
      %2222 = vmatprep.subr.bf16.mxu0 0
      %2223 = vmatpush1.bf16.msra.mxu0 0
      %2224 = vmatprep.subr.bf16.mxu0 0
      %2225 = vmatpush1.bf16.msra.mxu0 0
      %2226 = vmatprep.subr.bf16.mxu0 0
      %2227 = vmatpush1.bf16.msra.mxu0 0
      %2228 = vmatprep.mubr.bf16.mxu0 0
      %2229 = vmatmul.mubr.bf16.gmra.mrb[0].mxu0 %v2173
      %v2230 = vpop.f32.mrb[0].mxu0
      %v2231 = vadd.f32 %v2169, %v2230
      %v2232 = vpop.f32.mrb[0].mxu0
      %v2233 = vadd.f32 %v2169, %v2232
      %v2234 = vpop.f32.mrb[0].mxu0
      %v2235 = vpop.f32.mrb[0].mxu0
      %2236 = vdwg.mxu0
      %2237 = vmatprep.subr.bf16.mxu0 %v2150
      %2238 = vmatpush1.bf16.msra.mxu0 %v2146
      %2239 = vmatprep.subr.bf16.mxu0 %v2185
      %2240 = vmatpush1.bf16.msra.mxu0 %v2182
      %2241 = vmatprep.subr.bf16.mxu0 0
      %2242 = vmatpush1.bf16.msra.mxu0 0
      %2243 = vmatprep.subr.bf16.mxu0 0
      %2244 = vmatpush1.bf16.msra.mxu0 0
      %2245 = vmatprep.subr.bf16.mxu0 0
      %2246 = vmatpush1.bf16.msra.mxu0 0
      %2247 = vmatprep.subr.bf16.mxu0 0
      %2248 = vmatpush1.bf16.msra.mxu0 0
      %2249 = vmatprep.subr.bf16.mxu0 0
      %2250 = vmatpush1.bf16.msra.mxu0 0
      %2251 = vmatprep.subr.bf16.mxu0 0
      %2252 = vmatpush1.bf16.msra.mxu0 0
      %2253 = vmatprep.subr.bf16.mxu0 0
      %2254 = vmatpush1.bf16.msra.mxu0 0
      %2255 = vmatprep.subr.bf16.mxu0 0
      %2256 = vmatpush1.bf16.msra.mxu0 0
      %2257 = vmatprep.subr.bf16.mxu0 0
      %2258 = vmatpush1.bf16.msra.mxu0 0
      %2259 = vmatprep.subr.bf16.mxu0 0
      %2260 = vmatpush1.bf16.msra.mxu0 0
      %2261 = vmatprep.subr.bf16.mxu0 0
      %2262 = vmatpush1.bf16.msra.mxu0 0
      %2263 = vmatprep.subr.bf16.mxu0 0
      %2264 = vmatpush1.bf16.msra.mxu0 0
      %2265 = vmatprep.subr.bf16.mxu0 0
      %2266 = vmatpush1.bf16.msra.mxu0 0
      %2267 = vmatprep.subr.bf16.mxu0 0
      %2268 = vmatpush1.bf16.msra.mxu0 0
      %2269 = vmatprep.mubr.bf16.mxu0 0
      %2270 = vmatmul.mubr.bf16.gmra.mrb[0].mxu0 %v2173
      %v2271 = vpop.f32.mrb[0].mxu0
      %v2272 = vadd.f32 %v2169, %v2271
      %v2273 = vpop.f32.mrb[0].mxu0
      %v2274 = vadd.f32 %v2169, %v2273
      %v2275 = vpop.f32.mrb[0].mxu0
      %v2276 = vpop.f32.mrb[0].mxu0
      %2277 = vdwg.mxu0
      %2278 = vmatprep.subr.bf16.mxu0 %v2158
      %2279 = vmatpush1.bf16.msra.mxu0 %v2154
      %2280 = vmatprep.subr.bf16.mxu0 %v2191
      %2281 = vmatpush1.bf16.msra.mxu0 %v2188
      %2282 = vmatprep.subr.bf16.mxu0 0
      %2283 = vmatpush1.bf16.msra.mxu0 0
      %2284 = vmatprep.subr.bf16.mxu0 0
      %2285 = vmatpush1.bf16.msra.mxu0 0
      %2286 = vmatprep.subr.bf16.mxu0 0
      %2287 = vmatpush1.bf16.msra.mxu0 0
      %2288 = vmatprep.subr.bf16.mxu0 0
      %2289 = vmatpush1.bf16.msra.mxu0 0
      %2290 = vmatprep.subr.bf16.mxu0 0
      %2291 = vmatpush1.bf16.msra.mxu0 0
      %2292 = vmatprep.subr.bf16.mxu0 0
      %2293 = vmatpush1.bf16.msra.mxu0 0
      %2294 = vmatprep.subr.bf16.mxu0 0
      %2295 = vmatpush1.bf16.msra.mxu0 0
      %2296 = vmatprep.subr.bf16.mxu0 0
      %2297 = vmatpush1.bf16.msra.mxu0 0
      %2298 = vmatprep.subr.bf16.mxu0 0
      %2299 = vmatpush1.bf16.msra.mxu0 0
      %2300 = vmatprep.subr.bf16.mxu0 0
      %2301 = vmatpush1.bf16.msra.mxu0 0
      %2302 = vmatprep.subr.bf16.mxu0 0
      %2303 = vmatpush1.bf16.msra.mxu0 0
      %2304 = vmatprep.subr.bf16.mxu0 0
      %2305 = vmatpush1.bf16.msra.mxu0 0
      %2306 = vmatprep.subr.bf16.mxu0 0
      %2307 = vmatpush1.bf16.msra.mxu0 0
      %2308 = vmatprep.subr.bf16.mxu0 0
      %2309 = vmatpush1.bf16.msra.mxu0 0
      %2310 = vmatprep.mubr.bf16.mxu0 0
      %2311 = vmatmul.mubr.bf16.gmra.mrb[0].mxu0 %v2173
      %v2312 = vpop.f32.mrb[0].mxu0
      %v2313 = vadd.f32 %v2169, %v2312
      %v2314 = vpop.f32.mrb[0].mxu0
      %v2315 = vadd.f32 %v2169, %v2314
      %v2316 = vpop.f32.mrb[0].mxu0
      %v2317 = vpop.f32.mrb[0].mxu0
      %2318 = vdwg.mxu0
      %2319 = vmatprep.subr.bf16.mxu0 0
      %2320 = vmatpush1.bf16.msra.mxu0 %v2162
      %2321 = vmatprep.subr.bf16.mxu0 0
      %2322 = vmatpush1.bf16.msra.mxu0 %v2194
      %2323 = vmatprep.subr.bf16.mxu0 0
      %2324 = vmatpush1.bf16.msra.mxu0 0
      %2325 = vmatprep.subr.bf16.mxu0 0
      %2326 = vmatpush1.bf16.msra.mxu0 0
      %2327 = vmatprep.subr.bf16.mxu0 0
      %2328 = vmatpush1.bf16.msra.mxu0 0
      %2329 = vmatprep.subr.bf16.mxu0 0
      %2330 = vmatpush1.bf16.msra.mxu0 0
      %2331 = vmatprep.subr.bf16.mxu0 0
      %2332 = vmatpush1.bf16.msra.mxu0 0
      %2333 = vmatprep.subr.bf16.mxu0 0
      %2334 = vmatpush1.bf16.msra.mxu0 0
      %2335 = vmatprep.subr.bf16.mxu0 0
      %2336 = vmatpush1.bf16.msra.mxu0 0
      %2337 = vmatprep.subr.bf16.mxu0 0
      %2338 = vmatpush1.bf16.msra.mxu0 0
      %2339 = vmatprep.subr.bf16.mxu0 0
      %2340 = vmatpush1.bf16.msra.mxu0 0
      %2341 = vmatprep.subr.bf16.mxu0 0
      %2342 = vmatpush1.bf16.msra.mxu0 0
      %2343 = vmatprep.subr.bf16.mxu0 0
      %2344 = vmatpush1.bf16.msra.mxu0 0
      %2345 = vmatprep.subr.bf16.mxu0 0
      %2346 = vmatpush1.bf16.msra.mxu0 0
      %2347 = vmatprep.subr.bf16.mxu0 0
      %2348 = vmatpush1.bf16.msra.mxu0 0
      %2349 = vmatprep.subr.bf16.mxu0 0
      %2350 = vmatpush1.bf16.msra.mxu0 0
      %2351 = vmatprep.mubr.bf16.mxu0 0
      %2352 = vmatmul.mubr.bf16.gmra.mrb[0].mxu0 %v2173
      %v2353 = vpop.f32.mrb[0].mxu0
      %v2354 = vadd.f32 %v2169, %v2353
      %v2355 = vpop.f32.mrb[0].mxu0
      %v2356 = vpop.f32.mrb[0].mxu0
      %v2357 = vpop.f32.mrb[0].mxu0
      %2358 = vdwg.mxu0
      %2359 = vst [vmem:[%s197] sm:$0xff] %v2231
      %2360 = vst [vmem:[%s197 + $0x8] sm:$0xff] %v2233
      %2361 = vst [vmem:[%s197 + $0x10] sm:$0xff] %v2272
      %2362 = vst [vmem:[%s197 + $0x18] sm:$0xff] %v2274
      %2363 = vst [vmem:[%s197 + $0x20] sm:$0xff] %v2313
      %2364 = vst [vmem:[%s197 + $0x28] sm:$0xff] %v2315
      %2365 = vst [vmem:[%s197 + $0x30] sm:$0xff] %v2354
      %p2366 = scmp.lt.s32.totalorder %s15, 1
      %s2367 = scalar_select %p2366, %s15, 1
      %s2368 = smul.addr %s2367, 7
      %s2369 = smul.addr %s2368, 8
      %s2370 = scalar_lea.vmem %s4, %s2369
      // Predicated region
      $region37: #{aspp_forward.1} parent=35 // pred_check
        %p2371 = pneg %p122
      $region38: #{aspp_forward.1} parent=35 // pred_check_branch
        %2373 = sbr.rel (%p2371) target = $region40
      $region39: #{aspp_forward.1} parent=35 // pred_region
        _
      $region40: #{aspp_forward.1} parent=35 // pred_fallthru
        _
    $region36: #{aspp_forward.1} parent=5 // pred_fallthru
      _
    %p2374 = scmp.le.s32.totalorder 2, %s10
    // Predicated region
    $region41: #{aspp_forward.1} parent=5 // pred_check
      %p2375 = pneg %p2374
    $region42: #{aspp_forward.1} parent=5 // pred_check_branch
      %2377 = sbr.rel (%p2375) target = $region44
    $region43: #{aspp_forward.1} parent=5 // pred_region
      %s2378 = ssub.s32 %s10, 2
      // Predicated region
      $region45: #{aspp_forward.1} parent=43 // pred_check
        %p2379 = pneg %p128
      $region46: #{aspp_forward.1} parent=43 // pred_check_branch
        %2381 = sbr.rel (%p2379) target = $region48
      $region47: #{aspp_forward.1} parent=43 // pred_region
        %p2382 = scmp.lt.s32.totalorder %s16, 1
        %s2383 = scalar_select %p2382, %s16, 1
        %s2384 = smul.addr %s2383, 7
        %s2385 = smul.addr %s2384, 8
        %s2386 = scalar_lea.vmem %s4, %s2385
      $region48: #{aspp_forward.1} parent=43 // pred_fallthru
        _
    $region44: #{aspp_forward.1} parent=5 // pred_fallthru
      _
  $region6: #{aspp_forward.1} parent=0 // loop_footer
    %s14 = sadd.s32 1, %s10
  $region7: #{aspp_forward.1} parent=0 // loop_footer_branch
    %9 = sbr.rel target = $region3
  $region8: #{aspp_forward.1} parent=0 // loop_exit
    _

</llo_original>
